<compile_context>
chip_gen: v7x
topology: tpu7x:2x2x1
jax: 0.10.0
libtpu: 0.0.40
codegen_flags: <defaults>
</compile_context>

<pallas_src>
import functools

import jax
import jax.numpy as jnp
from jax.experimental import pallas as pl
from jax.experimental.pallas import tpu as pltpu

_VMEM_LIMIT = 64 * 1024 * 1024  # <= physical VMEM on every generation (v7x = 64 MiB)


def _round_up(x, m):
    return (x + m - 1) // m * m


# ----------------------------------------------------------------------------
# Kernel 1: batched embedding gather
#   ids (scalar-prefetched, SMEM) index per-row DMAs from the HBM table.
# ----------------------------------------------------------------------------
def _embed_kernel(ids_ref, emb_hbm, out_ref, buf, sem):
    g = pl.program_id(0)
    tg = out_ref.shape[0]
    base = g * tg

    @pl.loop(0, tg)
    def _start(t):
        row = ids_ref[base + t]
        pltpu.make_async_copy(
            emb_hbm.at[pl.ds(row, 1), :],
            buf.at[pl.ds(t, 1), :],
            sem.at[0],
        ).start()

    @pl.loop(0, tg)
    def _wait(t):
        # Dummy src of identical shape; only shape/bytes + semaphore matter for wait.
        pltpu.make_async_copy(
            emb_hbm.at[pl.ds(0, 1), :],
            buf.at[pl.ds(t, 1), :],
            sem.at[0],
        ).wait()

    out_ref[...] = buf[...]


def embedding_lookup(ids_flat, emb_table, tg):
    n = ids_flat.shape[0]
    _, d = emb_table.shape
    return pl.pallas_call(
        _embed_kernel,
        out_shape=jax.ShapeDtypeStruct((n, d), emb_table.dtype),
        grid_spec=pltpu.PrefetchScalarGridSpec(
            num_scalar_prefetch=1,
            grid=(n // tg,),
            in_specs=[pl.BlockSpec(memory_space=pl.ANY)],     # table stays in HBM
            out_specs=pl.BlockSpec((tg, d), lambda g, ids: (g, 0)),
            scratch_shapes=[
                pltpu.VMEM((tg, d), emb_table.dtype),
                pltpu.SemaphoreType.DMA((1,)),
            ],
        ),
        compiler_params=pltpu.CompilerParams(
            dimension_semantics=("parallel",),
        ),
    )(ids_flat, emb_table)


# ----------------------------------------------------------------------------
# Kernel 2: ALL block layers fused (residual linear placeholder block)
#   grid = (N/tn, L); activations stay VMEM-resident across the layer axis.
# ----------------------------------------------------------------------------
def _blocks_kernel(x_ref, w_ref, o_ref, acc_ref):
    l = pl.program_id(1)

    @pl.when(l == 0)
    def _():
        acc_ref[...] = x_ref[...].astype(jnp.float32)

    x = acc_ref[...]
    acc_ref[...] = x + jnp.dot(
        x.astype(jnp.bfloat16),
        w_ref[0].astype(jnp.bfloat16),
        preferred_element_type=jnp.float32,
    )

    @pl.when(l == pl.num_programs(1) - 1)
    def _():
        o_ref[...] = acc_ref[...].astype(o_ref.dtype)


def fused_blocks(x, w_stack, tn):
    n, d = x.shape
    num_layers = w_stack.shape[0]
    return pl.pallas_call(
        _blocks_kernel,
        out_shape=jax.ShapeDtypeStruct((n, d), jnp.float32),
        grid_spec=pltpu.PrefetchScalarGridSpec(
            num_scalar_prefetch=0,
            grid=(n // tn, num_layers),
            in_specs=[
                pl.BlockSpec((tn, d), lambda i, l: (i, 0)),
                pl.BlockSpec((1, d, d), lambda i, l: (l, 0, 0)),
            ],
            out_specs=pl.BlockSpec((tn, d), lambda i, l: (i, 0)),
            scratch_shapes=[pltpu.VMEM((tn, d), jnp.float32)],
        ),
        compiler_params=pltpu.CompilerParams(
            dimension_semantics=("parallel", "arbitrary"),
            vmem_limit_bytes=_VMEM_LIMIT,
        ),
    )(x, w_stack)


# ----------------------------------------------------------------------------
# Kernel 3: fused RMSNorm + output projection, tiled over tokens and vocab
#   logits[n, v] = (x * rsqrt(mean(x^2) + eps) * gamma) @ W_out[v, :].T
# ----------------------------------------------------------------------------
def _head_kernel(eps, x_ref, g_ref, w_ref, o_ref, xn_ref):
    v = pl.program_id(1)

    @pl.when(v == 0)
    def _():
        x = x_ref[...].astype(jnp.float32)
        inv = jax.lax.rsqrt(jnp.mean(x * x, axis=-1, keepdims=True) + eps)
        xn_ref[...] = (x * inv * g_ref[...].astype(jnp.float32)).astype(jnp.bfloat16)

    # Contract last dims: [tn, D] x [tv, D] -> [tn, tv]; no weight transpose needed.
    o_ref[...] = jax.lax.dot_general(
        xn_ref[...],
        w_ref[...].astype(jnp.bfloat16),
        dimension_numbers=(((1,), (1,)), ((), ())),
        preferred_element_type=jnp.float32,
    )


def norm_and_project(x, gamma, w_out, eps, tn, tv):
    n, d = x.shape
    v = w_out.shape[0]
    return pl.pallas_call(
        functools.partial(_head_kernel, eps),
        out_shape=jax.ShapeDtypeStruct((n, v), jnp.float32),
        grid_spec=pltpu.PrefetchScalarGridSpec(
            num_scalar_prefetch=0,
            grid=(n // tn, v // tv),
            in_specs=[
                pl.BlockSpec((tn, d), lambda i, j: (i, 0)),
                pl.BlockSpec((1, d), lambda i, j: (0, 0)),
                pl.BlockSpec((tv, d), lambda i, j: (j, 0)),
            ],
            out_specs=pl.BlockSpec((tn, tv), lambda i, j: (i, j)),
            scratch_shapes=[pltpu.VMEM((tn, d), jnp.bfloat16)],
        ),
        compiler_params=pltpu.CompilerParams(
            dimension_semantics=("parallel", "arbitrary"),
            vmem_limit_bytes=_VMEM_LIMIT,
        ),
    )(x, gamma.reshape(1, d), w_out)


# ----------------------------------------------------------------------------
# Model wrapper
# ----------------------------------------------------------------------------
def init_params(key, vocab_size, emb_dim, nb_layers, weight_tying=False):
    emb_std = emb_dim ** -0.5
    k_emb, k_out, k_blk = jax.random.split(key, 3)
    emb = (jax.random.truncated_normal(
        k_emb, -3.0, 3.0, (vocab_size, emb_dim), jnp.float32) * emb_std)
    if weight_tying:
        out_w = emb
    else:
        out_w = (jax.random.truncated_normal(
            k_out, -3.0, 3.0, (vocab_size, emb_dim), jnp.float32) * emb_std)
    blocks = (jax.random.normal(k_blk, (nb_layers, emb_dim, emb_dim), jnp.float32)
              * (0.02 / max(nb_layers, 1)))
    gamma = jnp.ones((emb_dim,), jnp.float32)  # RMSNorm weight (reset to ones)
    return dict(emb=emb, out_w=out_w, blocks=blocks, gamma=gamma)


def block_language_model_forward(params, token_ids, norm_eps=1e-5):
    emb = params["emb"]        # [V, D]
    out_w = params["out_w"]    # [V, D]
    gamma = params["gamma"]    # [D]
    blocks = params["blocks"]  # [L, D, D]

    b, s = token_ids.shape
    vocab, d = emb.shape
    n = b * s

    # Tile sizes (sublane/lane aligned; modest enough for v7x's 64 MiB VMEM,
    # BlockSpec double-buffering hides the weight streams behind the MXU).
    tn = min(256, _round_up(n, 8))
    n_pad = _round_up(n, tn)
    tg = 64 if tn % 64 == 0 else tn
    tv = min(512, _round_up(vocab, 128))
    v_pad = _round_up(vocab, tv)

    ids = token_ids.reshape(-1).astype(jnp.int32)
    if n_pad != n:
        ids = jnp.pad(ids, (0, n_pad - n))           # padded tokens -> row 0 (sliced off)
    w_out = out_w
    if v_pad != vocab:
        w_out = jnp.pad(out_w, ((0, v_pad - vocab), (0, 0)))

    x = embedding_lookup(ids, emb, tg)               # [n_pad, D]
    if blocks.shape[0] > 0:
        x = fused_blocks(x, blocks, tn)              # [n_pad, D] f32
    logits = norm_and_project(x, gamma, w_out, norm_eps, tn, tv)  # [n_pad, v_pad]
    return logits[:n, :vocab].reshape(b, s, vocab)


if __name__ == "__main__":
    VOCAB, EMB_DIM, NB_LAYERS = 256, 128, 2
    B, S = 2, 64
    NORM_EPS = 1e-5

    key = jax.random.PRNGKey(0)
    k_ids, k_params = jax.random.split(key)
    params = init_params(k_params, VOCAB, EMB_DIM, NB_LAYERS, weight_tying=False)
    token_ids = jax.random.randint(k_ids, (B, S), 0, VOCAB, dtype=jnp.int32)

    fwd = jax.jit(functools.partial(block_language_model_forward, norm_eps=NORM_EPS))
    logits = fwd(params, token_ids)
    jax.block_until_ready(logits)

    # Pure-JAX reference (same bf16-at-the-dot policy as the kernels).
    ids = token_ids.reshape(-1)
    x = params["emb"][ids].astype(jnp.float32)
    for l in range(NB_LAYERS):
        w = params["blocks"][l]
        x = x + jnp.dot(x.astype(jnp.bfloat16), w.astype(jnp.bfloat16),
                        preferred_element_type=jnp.float32)
    inv = jax.lax.rsqrt(jnp.mean(x * x, axis=-1, keepdims=True) + NORM_EPS)
    xn = (x * inv * params["gamma"]).astype(jnp.bfloat16)
    ref = jax.lax.dot_general(xn, params["out_w"].astype(jnp.bfloat16),
                              (((1,), (1,)), ((), ())),
                              preferred_element_type=jnp.float32).reshape(B, S, VOCAB)

    assert logits.shape == (B, S, VOCAB)
    err = float(jnp.max(jnp.abs(logits - ref)))
    assert jnp.allclose(logits, ref, atol=2e-2, rtol=2e-2), err

    print("KERNEL_OK")
</pallas_src>

<mosaic_0001>
module attributes {stable_mosaic.version = 11 : i64} {
  func.func @_head_kernel(%arg0: i32, %arg1: i32, %arg2: memref<128x128xf32, #tpu.memory_space<vmem>>, %arg3: memref<1x128xf32, #tpu.memory_space<vmem>>, %arg4: memref<256x128xf32, #tpu.memory_space<vmem>>, %arg5: memref<128x256xf32, #tpu.memory_space<vmem>>, %arg6: memref<128x128xbf16, #tpu.memory_space<vmem>>) attributes {dimension_semantics = [#tpu.dimension_semantics<parallel>, #tpu.dimension_semantics<arbitrary>], iteration_bounds = array<i64: 1, 1>, scalar_prefetch = 0 : i64, scratch_operands = 1 : i64, tpu.core_type = #tpu.core_type<tc>, window_params = [{transform_indices = @transform_0, window_bounds = array<i64: 128, 128>}, {pipeline_mode = #tpu.pipeline_mode<synchronous>, transform_indices = @transform_1, window_bounds = array<i64: 1, 128>}, {transform_indices = @transform_2, window_bounds = array<i64: 256, 128>}, {transform_indices = @transform_3, window_bounds = array<i64: 128, 256>}]} {
    %c0_i32 = arith.constant 0 : i32
    %0 = arith.cmpi eq, %arg1, %c0_i32 : i32
    %1 = arith.extui %0 : i1 to i32
    %c0_i32_0 = arith.constant 0 : i32
    %2 = arith.cmpi ne, %1, %c0_i32_0 : i32
    scf.if %2 {
      %c0_6 = arith.constant 0 : index
      %c0_7 = arith.constant 0 : index
      %8 = vector.load %arg2[%c0_6, %c0_7] : memref<128x128xf32, #tpu.memory_space<vmem>>, vector<128x128xf32>
      %9 = arith.mulf %8, %8 : vector<128x128xf32>
      %cst_8 = arith.constant dense<0.000000e+00> : vector<128xf32>
      %10 = vector.multi_reduction <add>, %9, %cst_8 [1] : vector<128x128xf32> to vector<128xf32>
      %11 = vector.shape_cast %10 : vector<128xf32> to vector<128x1xf32>
      %cst_9 = arith.constant 1.280000e+02 : f32
      %12 = vector.broadcast %cst_9 : f32 to vector<128x1xf32>
      %13 = arith.divf %11, %12 : vector<128x1xf32>
      %cst_10 = arith.constant 9.99999974E-6 : f32
      %14 = vector.broadcast %cst_10 : f32 to vector<128x1xf32>
      %15 = arith.addf %13, %14 : vector<128x1xf32>
      %16 = math.rsqrt %15 : vector<128x1xf32>
      %17 = vector.broadcast %16 : vector<128x1xf32> to vector<128x128xf32>
      %18 = arith.mulf %8, %17 : vector<128x128xf32>
      %c0_11 = arith.constant 0 : index
      %c0_12 = arith.constant 0 : index
      %19 = vector.load %arg3[%c0_11, %c0_12] : memref<1x128xf32, #tpu.memory_space<vmem>>, vector<1x128xf32>
      %20 = vector.broadcast %19 : vector<1x128xf32> to vector<128x128xf32>
      %21 = arith.mulf %18, %20 : vector<128x128xf32>
      %22 = arith.truncf %21 : vector<128x128xf32> to vector<128x128xbf16>
      %c0_13 = arith.constant 0 : index
      %c0_14 = arith.constant 0 : index
      %23 = vector.load %arg6[%c0_13, %c0_14] : memref<128x128xbf16, #tpu.memory_space<vmem>>, vector<128x128xbf16>
      tpu.vector_store %arg6[%c0_13, %c0_14], %22 {strides = array<i32>} : memref<128x128xbf16, #tpu.memory_space<vmem>>, vector<128x128xbf16>,
    } else {
    }
    %c0 = arith.constant 0 : index
    %c0_1 = arith.constant 0 : index
    %3 = vector.load %arg6[%c0, %c0_1] : memref<128x128xbf16, #tpu.memory_space<vmem>>, vector<128x128xbf16>
    %c0_2 = arith.constant 0 : index
    %c0_3 = arith.constant 0 : index
    %4 = vector.load %arg4[%c0_2, %c0_3] : memref<256x128xf32, #tpu.memory_space<vmem>>, vector<256x128xf32>
    %5 = arith.truncf %4 : vector<256x128xf32> to vector<256x128xbf16>
    %cst = arith.constant dense<0.000000e+00> : vector<128x256xf32>
    %6 = tpu.matmul %3, %5, %cst {dimension_numbers = #tpu.dot_dimension_numbers<[1], [1], [0], [0], [0, 0, 1, 0], [], []>} : vector<128x128xbf16>, vector<256x128xbf16>, vector<128x256xf32> -> vector<128x256xf32>
    %c0_4 = arith.constant 0 : index
    %c0_5 = arith.constant 0 : index
    %7 = vector.load %arg5[%c0_4, %c0_5] : memref<128x256xf32, #tpu.memory_space<vmem>>, vector<128x256xf32>
    tpu.vector_store %arg5[%c0_4, %c0_5], %6 {strides = array<i32>} : memref<128x256xf32, #tpu.memory_space<vmem>>, vector<128x256xf32>,
    return
  }
  func.func @transform_0(%arg0: i32, %arg1: i32) -> (i32, i32) {
    %c0_i32 = arith.constant 0 : i32
    %c0_i32_0 = arith.constant 0 : i32
    return %arg0, %c0_i32 : i32, i32
  }
  func.func @transform_1(%arg0: i32, %arg1: i32) -> (i32, i32) {
    %c0_i32 = arith.constant 0 : i32
    %c0_i32_0 = arith.constant 0 : i32
    %c0_i32_1 = arith.constant 0 : i32
    return %c0_i32, %c0_i32_0 : i32, i32
  }
  func.func @transform_2(%arg0: i32, %arg1: i32) -> (i32, i32) {
    %c0_i32 = arith.constant 0 : i32
    %c0_i32_0 = arith.constant 0 : i32
    return %arg1, %c0_i32 : i32, i32
  }
  func.func @transform_3(%arg0: i32, %arg1: i32) -> (i32, i32) {
    %c0_i32 = arith.constant 0 : i32
    return %arg0, %arg1 : i32, i32
  }
}

module attributes {stable_mosaic.version = 11 : i64} {
  func.func @_blocks_kernel(%arg0: i32, %arg1: i32, %arg2: memref<128x128xf32, #tpu.memory_space<vmem>>, %arg3: memref<1x128x128xf32, #tpu.memory_space<vmem>>, %arg4: memref<128x128xf32, #tpu.memory_space<vmem>>, %arg5: memref<128x128xf32, #tpu.memory_space<vmem>>) attributes {dimension_semantics = [#tpu.dimension_semantics<parallel>, #tpu.dimension_semantics<arbitrary>], iteration_bounds = array<i64: 1, 2>, scalar_prefetch = 0 : i64, scratch_operands = 1 : i64, tpu.core_type = #tpu.core_type<tc>, window_params = [{transform_indices = @transform_0, window_bounds = array<i64: 128, 128>}, {transform_indices = @transform_1, window_bounds = array<i64: 1, 128, 128>}, {transform_indices = @transform_2, window_bounds = array<i64: 128, 128>}]} {
    %c0_i32 = arith.constant 0 : i32
    %0 = arith.cmpi eq, %arg1, %c0_i32 : i32
    %1 = arith.extui %0 : i1 to i32
    %c0_i32_0 = arith.constant 0 : i32
    %2 = arith.cmpi ne, %1, %c0_i32_0 : i32
    scf.if %2 {
      %c0_8 = arith.constant 0 : index
      %c0_9 = arith.constant 0 : index
      %14 = vector.load %arg2[%c0_8, %c0_9] : memref<128x128xf32, #tpu.memory_space<vmem>>, vector<128x128xf32>
      %c0_10 = arith.constant 0 : index
      %c0_11 = arith.constant 0 : index
      %15 = vector.load %arg5[%c0_10, %c0_11] : memref<128x128xf32, #tpu.memory_space<vmem>>, vector<128x128xf32>
      tpu.vector_store %arg5[%c0_10, %c0_11], %14 {strides = array<i32>} : memref<128x128xf32, #tpu.memory_space<vmem>>, vector<128x128xf32>,
    } else {
    }
    %c0 = arith.constant 0 : index
    %c0_1 = arith.constant 0 : index
    %3 = vector.load %arg5[%c0, %c0_1] : memref<128x128xf32, #tpu.memory_space<vmem>>, vector<128x128xf32>
    %4 = arith.truncf %3 : vector<128x128xf32> to vector<128x128xbf16>
    %c0_2 = arith.constant 0 : index
    %c0_3 = arith.constant 0 : index
    %c0_4 = arith.constant 0 : index
    %5 = vector.load %arg3[%c0_2, %c0_3, %c0_4] : memref<1x128x128xf32, #tpu.memory_space<vmem>>, vector<1x128x128xf32>
    %6 = vector.shape_cast %5 : vector<1x128x128xf32> to vector<128x128xf32>
    %7 = arith.truncf %6 : vector<128x128xf32> to vector<128x128xbf16>
    %cst = arith.constant dense<0.000000e+00> : vector<128x128xf32>
    %8 = tpu.matmul %4, %7, %cst {dimension_numbers = #tpu.dot_dimension_numbers<[1], [0], [0], [1], [0, 0, 1, 1], [], []>} : vector<128x128xbf16>, vector<128x128xbf16>, vector<128x128xf32> -> vector<128x128xf32>
    %9 = arith.addf %3, %8 : vector<128x128xf32>
    %c0_5 = arith.constant 0 : index
    %c0_6 = arith.constant 0 : index
    %10 = vector.load %arg5[%c0_5, %c0_6] : memref<128x128xf32, #tpu.memory_space<vmem>>, vector<128x128xf32>
    tpu.vector_store %arg5[%c0_5, %c0_6], %9 {strides = array<i32>} : memref<128x128xf32, #tpu.memory_space<vmem>>, vector<128x128xf32>,
    %c1_i32 = arith.constant 1 : i32
    %11 = arith.cmpi eq, %arg1, %c1_i32 : i32
    %12 = arith.extui %11 : i1 to i32
    %c0_i32_7 = arith.constant 0 : i32
    %13 = arith.cmpi ne, %12, %c0_i32_7 : i32
    scf.if %13 {
      %c0_8 = arith.constant 0 : index
      %c0_9 = arith.constant 0 : index
      %14 = vector.load %arg5[%c0_8, %c0_9] : memref<128x128xf32, #tpu.memory_space<vmem>>, vector<128x128xf32>
      %c0_10 = arith.constant 0 : index
      %c0_11 = arith.constant 0 : index
      %15 = vector.load %arg4[%c0_10, %c0_11] : memref<128x128xf32, #tpu.memory_space<vmem>>, vector<128x128xf32>
      tpu.vector_store %arg4[%c0_10, %c0_11], %14 {strides = array<i32>} : memref<128x128xf32, #tpu.memory_space<vmem>>, vector<128x128xf32>,
    } else {
    }
    return
  }
  func.func @transform_0(%arg0: i32, %arg1: i32) -> (i32, i32) {
    %c0_i32 = arith.constant 0 : i32
    %c0_i32_0 = arith.constant 0 : i32
    return %arg0, %c0_i32 : i32, i32
  }
  func.func @transform_1(%arg0: i32, %arg1: i32) -> (i32, i32, i32) {
    %c0_i32 = arith.constant 0 : i32
    %c0_i32_0 = arith.constant 0 : i32
    %c0_i32_1 = arith.constant 0 : i32
    return %arg1, %c0_i32, %c0_i32_0 : i32, i32, i32
  }
  func.func @transform_2(%arg0: i32, %arg1: i32) -> (i32, i32) {
    %c0_i32 = arith.constant 0 : i32
    %c0_i32_0 = arith.constant 0 : i32
    return %arg0, %c0_i32 : i32, i32
  }
}

module attributes {stable_mosaic.version = 11 : i64} {
  func.func @_embed_kernel(%arg0: i32, %arg1: memref<128xi32, #tpu.memory_space<smem>>, %arg2: memref<256x128xf32, #tpu.memory_space<any>>, %arg3: memref<64x128xf32, #tpu.memory_space<vmem>>, %arg4: memref<64x128xf32, #tpu.memory_space<vmem>>, %arg5: memref<1x!tpu.dma_semaphore, #tpu.memory_space<semaphore_mem>>) attributes {dimension_semantics = [#tpu.dimension_semantics<parallel>], iteration_bounds = array<i64: 2>, scalar_prefetch = 1 : i64, scratch_operands = 2 : i64, tpu.core_type = #tpu.core_type<tc>, window_params = [{}, {transform_indices = @transform_1, window_bounds = array<i64: 64, 128>}]} {
    %c64_i32 = arith.constant 64 : i32
    %0 = arith.muli %arg0, %c64_i32 : i32
    %c0_i32 = arith.constant 0 : i32
    %c64_i32_0 = arith.constant 64 : i32
    %1 = arith.addi %c0_i32, %c64_i32_0 : i32
    %c1_i32 = arith.constant 1 : i32
    scf.for %arg6 = %c0_i32 to %1 step %c1_i32  : i32 {
      %c1_i32_9 = arith.constant 1 : i32
      %5 = arith.muli %arg6, %c1_i32_9 : i32
      %c0_i32_10 = arith.constant 0 : i32
      %6 = arith.addi %c0_i32_10, %5 : i32
      %7 = arith.addi %0, %6 : i32
      %8 = arith.index_cast %7 : i32 to index
      %9 = memref.load %arg1[%8] : memref<128xi32, #tpu.memory_space<smem>>
      %c0_i32_11 = arith.constant 0 : i32
      %c0_i32_12 = arith.constant 0 : i32
      %10 = tpu.memref_slice %arg2[%9, %c0_i32_12] : memref<256x128xf32, #tpu.memory_space<any>> -> memref<1x128xf32, #tpu.memory_space<any>>
      %c0_i32_13 = arith.constant 0 : i32
      %11 = tpu.memref_slice %arg4[%6, %c0_i32_13] : memref<64x128xf32, #tpu.memory_space<vmem>> -> memref<1x128xf32, #tpu.memory_space<vmem>>
      %12 = tpu.memref_slice %arg5[%c0_i32_11] : memref<1x!tpu.dma_semaphore, #tpu.memory_space<semaphore_mem>> -> memref<1x!tpu.dma_semaphore, #tpu.memory_space<semaphore_mem>>
      %13 = tpu.memref_squeeze %12 : memref<1x!tpu.dma_semaphore, #tpu.memory_space<semaphore_mem>> -> memref<!tpu.dma_semaphore, #tpu.memory_space<semaphore_mem>>
      tpu.enqueue_dma source(%10 : memref<1x128xf32, #tpu.memory_space<any>>) target(%11 : memref<1x128xf32, #tpu.memory_space<vmem>>) target_semaphore(%13 : memref<!tpu.dma_semaphore, #tpu.memory_space<semaphore_mem>>)
    }
    %c64_i32_1 = arith.constant 64 : i32
    %c0_i32_2 = arith.constant 0 : i32
    %c64_i32_3 = arith.constant 64 : i32
    %2 = arith.addi %c0_i32_2, %c64_i32_3 : i32
    %c1_i32_4 = arith.constant 1 : i32
    scf.for %arg6 = %c0_i32_2 to %2 step %c1_i32_4  : i32 {
      %c1_i32_9 = arith.constant 1 : i32
      %5 = arith.muli %arg6, %c1_i32_9 : i32
      %c0_i32_10 = arith.constant 0 : i32
      %6 = arith.addi %c0_i32_10, %5 : i32
      %c0_i32_11 = arith.constant 0 : i32
      %c0_i32_12 = arith.constant 0 : i32
      %c0_i32_13 = arith.constant 0 : i32
      %7 = tpu.memref_slice %arg2[%c0_i32_12, %c0_i32_13] : memref<256x128xf32, #tpu.memory_space<any>> -> memref<1x128xf32, #tpu.memory_space<any>>
      %c0_i32_14 = arith.constant 0 : i32
      %8 = tpu.memref_slice %arg4[%6, %c0_i32_14] : memref<64x128xf32, #tpu.memory_space<vmem>> -> memref<1x128xf32, #tpu.memory_space<vmem>>
      %9 = tpu.memref_slice %arg5[%c0_i32_11] : memref<1x!tpu.dma_semaphore, #tpu.memory_space<semaphore_mem>> -> memref<1x!tpu.dma_semaphore, #tpu.memory_space<semaphore_mem>>
      %10 = tpu.memref_squeeze %9 : memref<1x!tpu.dma_semaphore, #tpu.memory_space<semaphore_mem>> -> memref<!tpu.dma_semaphore, #tpu.memory_space<semaphore_mem>>
      tpu.wait_dma2 semaphore(%10 : memref<!tpu.dma_semaphore, #tpu.memory_space<semaphore_mem>>) src(%7 : memref<1x128xf32, #tpu.memory_space<any>>) dst(%8 : memref<1x128xf32, #tpu.memory_space<vmem>>)
    }
    %c64_i32_5 = arith.constant 64 : i32
    %c0 = arith.constant 0 : index
    %c0_6 = arith.constant 0 : index
    %3 = vector.load %arg4[%c0, %c0_6] : memref<64x128xf32, #tpu.memory_space<vmem>>, vector<64x128xf32>
    %c0_7 = arith.constant 0 : index
    %c0_8 = arith.constant 0 : index
    %4 = vector.load %arg3[%c0_7, %c0_8] : memref<64x128xf32, #tpu.memory_space<vmem>>, vector<64x128xf32>
    tpu.vector_store %arg3[%c0_7, %c0_8], %3 {strides = array<i32>} : memref<64x128xf32, #tpu.memory_space<vmem>>, vector<64x128xf32>,
    return
  }
  func.func @transform_1(%arg0: i32, %arg1: memref<128xi32, #tpu.memory_space<smem>>) -> (i32, i32) {
    %c0_i32 = arith.constant 0 : i32
    %c0_i32_0 = arith.constant 0 : i32
    return %arg0, %c0_i32 : i32, i32
  }
}

</mosaic_0001>

<llo_original>
// kernel: block_language_model_forward.3
$region0: #{block_language_model_forward.3}
  #allocation0 [shape = 'u32[]', space=smem, size = 0x4, offset = 0x4, fixed_abs, tag = 'smem constant byte address 0x4 - core index']
  #allocation1 [shape = 'u32[144,128]{1,0:T(1,128)}', space=vmem, size = 0x12000, scoped, tag = 'internal scratch']
  #allocation2 [shape = 'f32[64,128]{1,0:T(8,128)}', space=vmem, size = 0x8000, scoped, tag = 'scratch operand']
  #allocation3 [shape = 's32[1]{0}', space=sflag, size = 0x4, scoped, tag = 'scratch operand']
  #allocation4 [shape = 's32[1]{0}', space=sflag, size = 0x4, scoped, tag = 'scoped memory for block_language_model_forward.3']
  #allocation5 [shape = 'u8[512]{0}', space=smem, size = 0x200, scoped, tag = 'prefetched SMEM operand 0']
  #allocation8 [shape = 's32[]', space=sflag, size = 0x4, offset = 0, fixed_abs, tag = 'sflag constant byte address 0x0 - dummy sync flag']
  #allocation9 [shape = 's32[]', space=sflag, size = 0x4, offset = 0, fixed_abs, tag = 'sflag constant byte address 0x0 - dummy sync flag']
  #allocation10 [shape = 'u32[]', space=smem, size = 0x4, offset = 0x44, fixed_abs, tag = 'smem constant byte address 0x44 - assertion arg 0']
  #allocation11 [shape = 'u32[]', space=smem, size = 0x4, offset = 0x48, fixed_abs, tag = 'smem constant byte address 0x48 - assertion arg 1']
  %s0 = inlined_call_operand.vmem [shape: s32[128], index: 0, kind: input, shape index: {}]
  %s1 = inlined_call_operand.hbm [shape: f32[256,128], index: 1, kind: input, shape index: {}]
  %s2 = inlined_call_operand.hbm [shape: f32[128,128], index: 2, kind: output, shape index: {}]
  %s3 = sld [smem:[#allocation0]]
  $region43: #{block_language_model_forward.3} parent=0
    _
  %s5 = ssub.s32 1, %s3
  %s6 = scalar_select 0, %s5, %s3
  %s7 = sshll.u32 %s0, 4
  %s8 = int_to_ptr.vmem [resolvable:$true] %s7
  %10 = dma.vmem_to_smem %s8, 16, [#allocation5], [#allocation4]
  %11 = dma.done [#allocation4], 16
  %12 = sfence
  $region1: #{block_language_model_forward.3} parent=0
    #allocation6 [shape = 'u8[65536]{0}', space=vmem, size = 0x10000, scoped, tag = 'output window, operand 0']
    #allocation7 [shape = 's32[2]{0}', space=sflag, size = 0x8, scoped, tag = 'scoped memory for block_language_model_forward.3']
    %13 = vsyncpa [#allocation7], 0
    %s14 = scalar_lea.sflag [#allocation7], 1
    %15 = vsyncpa %s14, 0
    loop: start=0, step=1, limit=3
    $region2: #{block_language_model_forward.3} parent=1 // loop_pre_header
      _
    $region3: #{block_language_model_forward.3} parent=1 // loop_header
      %s17 = sphi 0, %s21
      %p18 = scmp.ge.s32.totalorder %s17, 3
      %s26 = sphi 0, %s28
      %s29 = sphi 0, %s26
      %s39 = sphi 0, %s29
    $region4: #{block_language_model_forward.3} parent=1 // loop_header_branch
      %20 = sbr.rel (%p18) target = $region8
    $region5: #{block_language_model_forward.3} parent=1 // loop_body
      %s22 = ssub.s32 %s17, 1
      %s23 = sadd.s32 %s17, 1
      %s24 = ssub.s32 %s17, %s23
      %p25 = scmp.eq.s32.totalorder %s24, 0
      %s27 = sadd.s32 %s26, 1
      %s28 = scalar_select %p25, %s26, %s27
      %p30 = pneg %p25
      %p31 = scmp.eq.s32.totalorder %s17, 1
      %p32 = por %p30, %p31
      %p33 = scmp.ne.s32.totalorder %s26, %s29
      %p34 = scmp.eq.s32.totalorder %s17, 0
      %p35 = por %p33, %p34
      %p36 = scmp.ne.s32.totalorder %s26, %s29
      %p37 = scmp.eq.s32.totalorder %s22, 1
      %p38 = por %p36, %p37
      %p40 = scmp.ne.s32.totalorder %s29, %s39
      %p41 = scmp.eq.s32.totalorder %s22, 0
      %p42 = por %p40, %p41
      %p43 = scmp.lt.s32.totalorder %s17, 2
      // Predicated region
      $region9: #{block_language_model_forward.3} parent=5 // pred_check
        %p44 = pneg %p43
      $region10: #{block_language_model_forward.3} parent=5 // pred_check_branch
        %46 = sbr.rel (%p44) target = $region12
      $region11: #{block_language_model_forward.3} parent=5 // pred_region
        %p47 = pneg %p35
        %p48 = pneg %p32
        %s49 = sand.u32 %s26, 1
        %s50 = scalar_lea.sflag [#allocation7], %s49
        %s51 = sand.u32 %s26, 1
        %s52 = smul.addr %s51, 64
        %s53 = scalar_lea.vmem [#allocation6], %s52
        %s54 = smul.u32 8, %s17
        %s55 = smul.u32 %s17, 64
        loop: start=0, step=1, limit=64
        $region13: #{block_language_model_forward.3} parent=11 // loop_pre_header
          _
        $region14: #{block_language_model_forward.3} parent=11 // loop_header
          %s57 = sphi 0, %s61
          %p58 = scmp.ge.s32.totalorder %s57, 64
        $region15: #{block_language_model_forward.3} parent=11 // loop_header_branch
          %60 = sbr.rel (%p58) target = $region19
        $region16: #{block_language_model_forward.3} parent=11 // loop_body
          %s62 = sadd.s32 %s55, %s57
          %s63 = sld [smem:[#allocation5 + %s62]]
          %s64 = smul.addr %s63, 16
          %s65 = scalar_lea.hbm %s1, %s64
          %s66 = scalar_lea.vmem [#allocation2], %s57
          // Predicated region
          $region20: #{block_language_model_forward.3} parent=16 // pred_check
            _
          $region21: #{block_language_model_forward.3} parent=16 // pred_check_branch
            %68 = sbr.rel target = $region23
          $region22: #{block_language_model_forward.3} parent=16 // pred_region
            %69 = sst [smem:[#allocation10]] [#allocation9]
            %70 = sst [smem:[#allocation11]] [#allocation8]
          $region23: #{block_language_model_forward.3} parent=16 // pred_fallthru
            _
          %72 = shalt.err (0)
          %s74 = sshll.u32 %s66, 4
          %s75 = int_to_ptr.vmem [resolvable:$true] %s74
          %77 = dma.hbm_to_vmem [thread:$0]  %s65, 16, %s75, [#allocation3]
        $region17: #{block_language_model_forward.3} parent=11 // loop_footer
          %s61 = sadd.s32 1, %s57
        $region18: #{block_language_model_forward.3} parent=11 // loop_footer_branch
          %56 = sbr.rel target = $region14
        $region19: #{block_language_model_forward.3} parent=11 // loop_exit
          _
        loop: start=0, step=1, limit=64
        $region24: #{block_language_model_forward.3} parent=11 // loop_pre_header
          _
        $region25: #{block_language_model_forward.3} parent=11 // loop_header
          %s79 = sphi 0, %s83
          %p80 = scmp.ge.s32.totalorder %s79, 64
        $region26: #{block_language_model_forward.3} parent=11 // loop_header_branch
          %82 = sbr.rel (%p80) target = $region30
        $region27: #{block_language_model_forward.3} parent=11 // loop_body
          %s84 = smul.u32 1, 1
          %s85 = sshll.u32 %s84, 4
          %86 = dma.done [#allocation3], %s85
        $region28: #{block_language_model_forward.3} parent=11 // loop_footer
          %s83 = sadd.s32 1, %s79
        $region29: #{block_language_model_forward.3} parent=11 // loop_footer_branch
          %78 = sbr.rel target = $region25
        $region30: #{block_language_model_forward.3} parent=11 // loop_exit
          _
        %v87 = vld [vmem:[#allocation2] sm:$0xff]
        %v88 = vld [vmem:[#allocation2 + $0x8] sm:$0xff]
        %v89 = vld [vmem:[#allocation2 + $0x10] sm:$0xff]
        %v90 = vld [vmem:[#allocation2 + $0x18] sm:$0xff]
        %v91 = vld [vmem:[#allocation2 + $0x20] sm:$0xff]
        %v92 = vld [vmem:[#allocation2 + $0x28] sm:$0xff]
        %v93 = vld [vmem:[#allocation2 + $0x30] sm:$0xff]
        %v94 = vld [vmem:[#allocation2 + $0x38] sm:$0xff]
        %95 = vst [vmem:[%s53] sm:$0xff] %v87
        %96 = vst [vmem:[%s53 + $0x8] sm:$0xff] %v88
        %97 = vst [vmem:[%s53 + $0x10] sm:$0xff] %v89
        %98 = vst [vmem:[%s53 + $0x18] sm:$0xff] %v90
        %99 = vst [vmem:[%s53 + $0x20] sm:$0xff] %v91
        %100 = vst [vmem:[%s53 + $0x28] sm:$0xff] %v92
        %101 = vst [vmem:[%s53 + $0x30] sm:$0xff] %v93
        %102 = vst [vmem:[%s53 + $0x38] sm:$0xff] %v94
        %s103 = sand.u32 %s26, 1
        %s104 = scalar_lea.sflag [#allocation7], %s103
        %s105 = sand.u32 %s26, 1
        %s106 = smul.addr %s105, 64
        %s107 = scalar_lea.vmem [#allocation6], %s106
        // Predicated region
        $region31: #{block_language_model_forward.3} parent=11 // pred_check
          %p108 = pneg %p32
        $region32: #{block_language_model_forward.3} parent=11 // pred_check_branch
          %110 = sbr.rel (%p108) target = $region34
        $region33: #{block_language_model_forward.3} parent=11 // pred_region
          %s111 = smul.u32 8, %s17
          %s113 = ssub.s32 1024, 1024
          %114 = vsyncadd %s104, %s113
          %s115 = smul.addr %s111, 128
          %s116 = scalar_lea.hbm %s2, %s115
          %s117 = sshll.u32 %s107, 4
          %s118 = int_to_ptr.vmem [resolvable:$true] %s117
          %123 = dma.vmem_to_hbm [thread:$0]  %s118, 1024, %s116, %s104, 128, 128, 8
        $region34: #{block_language_model_forward.3} parent=11 // pred_fallthru
          _
      $region12: #{block_language_model_forward.3} parent=5 // pred_fallthru
        _
      %p124 = scmp.le.s32.totalorder 1, %s17
      // Predicated region
      $region35: #{block_language_model_forward.3} parent=5 // pred_check
        %p125 = pneg %p124
      $region36: #{block_language_model_forward.3} parent=5 // pred_check_branch
        %127 = sbr.rel (%p125) target = $region38
      $region37: #{block_language_model_forward.3} parent=5 // pred_region
        %s128 = ssub.s32 %s17, 1
        // Predicated region
        $region39: #{block_language_model_forward.3} parent=37 // pred_check
          %p129 = pneg %p38
        $region40: #{block_language_model_forward.3} parent=37 // pred_check_branch
          %131 = sbr.rel (%p129) target = $region42
        $region41: #{block_language_model_forward.3} parent=37 // pred_region
          %s132 = sand.u32 %s29, 1
          %s133 = scalar_lea.sflag [#allocation7], %s132
          %s134 = sand.u32 %s29, 1
          %s135 = smul.addr %s134, 64
          %s136 = scalar_lea.vmem [#allocation6], %s135
          %137 = dma.done %s133, 1024
        $region42: #{block_language_model_forward.3} parent=37 // pred_fallthru
          _
      $region38: #{block_language_model_forward.3} parent=5 // pred_fallthru
        _
    $region6: #{block_language_model_forward.3} parent=1 // loop_footer
      %s21 = sadd.s32 1, %s17
    $region7: #{block_language_model_forward.3} parent=1 // loop_footer_branch
      %16 = sbr.rel target = $region3
    $region8: #{block_language_model_forward.3} parent=1 // loop_exit
      _
    %138 = vsyncpa [#allocation7], 1
    %s139 = scalar_lea.sflag [#allocation7], 1
    %140 = vsyncpa %s139, 1
  %141 = vsyncmov [#allocation3]
  %s142 = vpop.sfrf %141
  %p143 = scmp.eq.s32.totalorder %s142, 0
  %p144 = pneg %p143
  %146 = shalt.err (%p144)

// kernel: block_language_model_forward.4
$region0: #{block_language_model_forward.4}
  #allocation0 [shape = 'u32[]', space=smem, size = 0x4, offset = 0x4, fixed_abs, tag = 'smem constant byte address 0x4 - core index']
  #allocation1 [shape = 'u32[144,128]{1,0:T(1,128)}', space=vmem, size = 0x12000, scoped, tag = 'internal scratch']
  #allocation2 [shape = 'f32[128,128]{1,0:T(8,128)}', space=vmem, size = 0x10000, scoped, tag = 'scratch operand']
  %s0 = inlined_call_operand.hbm [shape: f32[128,128], index: 0, kind: input, shape index: {}]
  %s1 = inlined_call_operand.hbm [shape: f32[2,128,128], index: 1, kind: input, shape index: {}]
  %s2 = inlined_call_operand.hbm [shape: f32[128,128], index: 2, kind: output, shape index: {}]
  %s3 = sld [smem:[#allocation0]]
  $region57: #{block_language_model_forward.4} parent=0
    _
  %s5 = ssub.s32 1, %s3
  %s6 = scalar_select 0, %s5, %s3
  $region1: #{block_language_model_forward.4} parent=0
    #allocation3 [shape = 'u8[65536]{0}', space=vmem, size = 0x10000, scoped, tag = 'input window, operand 0, single buffered']
    #allocation4 [shape = 's32[2]{0}', space=sflag, size = 0x8, scoped, tag = 'scoped memory for block_language_model_forward.4']
    #allocation5 [shape = 's32[2]{0}', space=sflag, size = 0x8, scoped, tag = 'scoped memory for block_language_model_forward.4']
    #allocation6 [shape = 'u8[131072]{0}', space=vmem, size = 0x20000, scoped, tag = 'input window, operand 1']
    #allocation7 [shape = 's32[2]{0}', space=sflag, size = 0x8, scoped, tag = 'scoped memory for block_language_model_forward.4']
    #allocation8 [shape = 'u8[65536]{0}', space=vmem, size = 0x10000, scoped, tag = 'output window, operand 0, single buffered']
    %7 = vsyncpa [#allocation4], 0
    %8 = vsyncpa [#allocation7], 0
    %s9 = scalar_lea.sflag [#allocation7], 1
    %10 = vsyncpa %s9, 0
    %11 = vsyncpa [#allocation5], 0
    loop: start=0, step=1, limit=4
    $region2: #{block_language_model_forward.4} parent=1 // loop_pre_header
      _
    $region3: #{block_language_model_forward.4} parent=1 // loop_header
      %s13 = sphi 0, %s17
      %p14 = scmp.ge.s32.totalorder %s13, 4
      %s20 = sphi 0, %s32
      %s21 = sphi 0, %s28
      %s22 = sphi 0, %s20
      %s23 = sphi 0, %s21
      %s24 = sphi 0, %s22
      %s25 = sphi 0, %s23
      %s35 = sphi 0, %s37
      %s38 = sphi 0, %s35
      %s39 = sphi 0, %s38
      %s55 = sphi 0, %s39
      %s61 = sphi 0, %s63
      %s64 = sphi 0, %s61
      %s65 = sphi 0, %s64
      %s81 = sphi 0, %s65
      %s87 = sphi 0, %s89
      %s90 = sphi 0, %s87
      %s91 = sphi 0, %s90
      %s107 = sphi 0, %s91
    $region4: #{block_language_model_forward.4} parent=1 // loop_header_branch
      %16 = sbr.rel (%p14) target = $region8
    $region5: #{block_language_model_forward.4} parent=1 // loop_body
      %s18 = ssub.s32 %s13, 1
      %s19 = ssub.s32 %s13, 2
      %s26 = sadd.s32 1, %s21
      %p27 = scmp.ge.s32.totalorder %s26, 2
      %s28 = scalar_select %p27, 0, %s26
      %s29 = sadd.s32 1, %s20
      %s30 = scalar_select %p27, %s29, %s20
      %p31 = scmp.ge.s32.totalorder %s30, 1
      %s32 = scalar_select %p31, 0, %s30
      %s33 = ssub.s32 %s20, %s32
      %p34 = scmp.eq.s32.totalorder %s33, 0
      %s36 = sadd.s32 %s35, 1
      %s37 = scalar_select %p34, %s35, %s36
      %p40 = pneg %p34
      %p41 = scmp.eq.s32.totalorder %s13, 1
      %p42 = por %p40, %p41
      %p43 = scmp.ne.s32.totalorder %s35, %s38
      %p44 = scmp.eq.s32.totalorder %s13, 0
      %p45 = por %p43, %p44
      %p46 = scmp.ne.s32.totalorder %s35, %s38
      %p47 = scmp.eq.s32.totalorder %s18, 1
      %p48 = por %p46, %p47
      %p49 = scmp.ne.s32.totalorder %s38, %s39
      %p50 = scmp.eq.s32.totalorder %s18, 0
      %p51 = por %p49, %p50
      %p52 = scmp.ne.s32.totalorder %s38, %s39
      %p53 = scmp.eq.s32.totalorder %s19, 1
      %p54 = por %p52, %p53
      %p56 = scmp.ne.s32.totalorder %s39, %s55
      %p57 = scmp.eq.s32.totalorder %s19, 0
      %p58 = por %p56, %p57
      %s59 = ssub.s32 %s21, %s28
      %p60 = scmp.eq.s32.totalorder %s59, 0
      %s62 = sadd.s32 %s61, 1
      %s63 = scalar_select %p60, %s61, %s62
      %p66 = pneg %p60
      %p67 = scmp.eq.s32.totalorder %s13, 1
      %p68 = por %p66, %p67
      %p69 = scmp.ne.s32.totalorder %s61, %s64
      %p70 = scmp.eq.s32.totalorder %s13, 0
      %p71 = por %p69, %p70
      %p72 = scmp.ne.s32.totalorder %s61, %s64
      %p73 = scmp.eq.s32.totalorder %s18, 1
      %p74 = por %p72, %p73
      %p75 = scmp.ne.s32.totalorder %s64, %s65
      %p76 = scmp.eq.s32.totalorder %s18, 0
      %p77 = por %p75, %p76
      %p78 = scmp.ne.s32.totalorder %s64, %s65
      %p79 = scmp.eq.s32.totalorder %s19, 1
      %p80 = por %p78, %p79
      %p82 = scmp.ne.s32.totalorder %s65, %s81
      %p83 = scmp.eq.s32.totalorder %s19, 0
      %p84 = por %p82, %p83
      %s85 = ssub.s32 %s20, %s32
      %p86 = scmp.eq.s32.totalorder %s85, 0
      %s88 = sadd.s32 %s87, 1
      %s89 = scalar_select %p86, %s87, %s88
      %p92 = pneg %p86
      %p93 = scmp.eq.s32.totalorder %s13, 1
      %p94 = por %p92, %p93
      %p95 = scmp.ne.s32.totalorder %s87, %s90
      %p96 = scmp.eq.s32.totalorder %s13, 0
      %p97 = por %p95, %p96
      %p98 = scmp.ne.s32.totalorder %s87, %s90
      %p99 = scmp.eq.s32.totalorder %s18, 1
      %p100 = por %p98, %p99
      %p101 = scmp.ne.s32.totalorder %s90, %s91
      %p102 = scmp.eq.s32.totalorder %s18, 0
      %p103 = por %p101, %p102
      %p104 = scmp.ne.s32.totalorder %s90, %s91
      %p105 = scmp.eq.s32.totalorder %s19, 1
      %p106 = por %p104, %p105
      %p108 = scmp.ne.s32.totalorder %s91, %s107
      %p109 = scmp.eq.s32.totalorder %s19, 0
      %p110 = por %p108, %p109
      %p111 = scmp.le.s32.totalorder 1, %s13
      %p112 = scmp.lt.s32.totalorder %s13, 3
      %p113 = pnand %p111, %p112
      %p114 = pneg %p113
      // Predicated region
      $region9: #{block_language_model_forward.4} parent=5 // pred_check
        _
      $region10: #{block_language_model_forward.4} parent=5 // pred_check_branch
        %116 = sbr.rel (%p113) target = $region12
      $region11: #{block_language_model_forward.4} parent=5 // pred_region
        %s117 = ssub.s32 %s13, 1
        // Predicated region
        $region13: #{block_language_model_forward.4} parent=11 // pred_check
          %p118 = pneg %p51
        $region14: #{block_language_model_forward.4} parent=11 // pred_check_branch
          %120 = sbr.rel (%p118) target = $region16
        $region15: #{block_language_model_forward.4} parent=11 // pred_region
          %s121 = smul.u32 16, %s22
          %s123 = ssub.s32 2048, 2048
          %124 = vsyncadd [#allocation4], %s123
          %s125 = smul.addr %s121, 128
          %s126 = scalar_lea.hbm %s0, %s125
          %s127 = sshll.u32 [#allocation3], 4
          %s128 = int_to_ptr.vmem [resolvable:$true] %s127
          %133 = dma.hbm_to_vmem [thread:$0]  %s126, 2048, %s128, [#allocation4], 128, 128, 8
        $region16: #{block_language_model_forward.4} parent=11 // pred_fallthru
          _
      $region12: #{block_language_model_forward.4} parent=5 // pred_fallthru
        _
      %p134 = scmp.lt.s32.totalorder %s13, 2
      // Predicated region
      $region17: #{block_language_model_forward.4} parent=5 // pred_check
        %p135 = pneg %p134
      $region18: #{block_language_model_forward.4} parent=5 // pred_check_branch
        %137 = sbr.rel (%p135) target = $region20
      $region19: #{block_language_model_forward.4} parent=5 // pred_region
        // Predicated region
        $region21: #{block_language_model_forward.4} parent=19 // pred_check
          %p138 = pneg %p71
        $region22: #{block_language_model_forward.4} parent=19 // pred_check_branch
          %140 = sbr.rel (%p138) target = $region24
        $region23: #{block_language_model_forward.4} parent=19 // pred_region
          %s141 = sand.u32 %s61, 1
          %s142 = scalar_lea.sflag [#allocation7], %s141
          %s143 = sand.u32 %s61, 1
          %s144 = smul.addr %s143, 128
          %s145 = scalar_lea.vmem [#allocation6], %s144
          %s147 = ssub.s32 2048, 2048
          %148 = vsyncadd %s142, %s147
          %s149 = smul.addr %s21, 16
          %s150 = smul.addr %s149, 128
          %s151 = scalar_lea.hbm %s1, %s150
          %s152 = sshll.u32 %s145, 4
          %s153 = int_to_ptr.vmem [resolvable:$true] %s152
          %158 = dma.hbm_to_vmem [thread:$0]  %s151, 2048, %s153, %s142, 128, 128, 8
        $region24: #{block_language_model_forward.4} parent=19 // pred_fallthru
          _
      $region20: #{block_language_model_forward.4} parent=5 // pred_fallthru
        _
      %p159 = scmp.le.s32.totalorder 1, %s13
      %p160 = scmp.lt.s32.totalorder %s13, 3
      %p161 = pnand %p159, %p160
      %p162 = pneg %p161
      // Predicated region
      $region25: #{block_language_model_forward.4} parent=5 // pred_check
        _
      $region26: #{block_language_model_forward.4} parent=5 // pred_check_branch
        %164 = sbr.rel (%p161) target = $region28
      $region27: #{block_language_model_forward.4} parent=5 // pred_region
        %s165 = ssub.s32 %s13, 1
        // Predicated region
        $region29: #{block_language_model_forward.4} parent=27 // pred_check
          %p166 = pneg %p51
        $region30: #{block_language_model_forward.4} parent=27 // pred_check_branch
          %168 = sbr.rel (%p166) target = $region32
        $region31: #{block_language_model_forward.4} parent=27 // pred_region
          %169 = dma.done [#allocation4], 2048
        $region32: #{block_language_model_forward.4} parent=27 // pred_fallthru
          _
        %s170 = sand.u32 %s64, 1
        %s171 = scalar_lea.sflag [#allocation7], %s170
        %s172 = sand.u32 %s64, 1
        %s173 = smul.addr %s172, 128
        %s174 = scalar_lea.vmem [#allocation6], %s173
        // Predicated region
        $region33: #{block_language_model_forward.4} parent=27 // pred_check
          %p175 = pneg %p77
        $region34: #{block_language_model_forward.4} parent=27 // pred_check_branch
          %177 = sbr.rel (%p175) target = $region36
        $region35: #{block_language_model_forward.4} parent=27 // pred_region
          %178 = dma.done %s171, 2048
        $region36: #{block_language_model_forward.4} parent=27 // pred_fallthru
          _
        %p179 = pneg %p51
        %p180 = pneg %p48
        %s181 = sand.u32 %s64, 1
        %s182 = scalar_lea.sflag [#allocation7], %s181
        %s183 = sand.u32 %s64, 1
        %s184 = smul.addr %s183, 128
        %s185 = scalar_lea.vmem [#allocation6], %s184
        %p186 = pneg %p77
        %p187 = pneg %p74
        %p188 = pneg %p103
        %p189 = pneg %p100
        %s190 = smul.u32 16, %s22
        %s191 = smul.u32 16, %s22
        %p193 = scmp.eq.s32.totalorder %s23, 0
        // Predicated region
        $region37: #{block_language_model_forward.4} parent=27 // pred_check
          %p194 = pneg %p193
        $region38: #{block_language_model_forward.4} parent=27 // pred_check_branch
          %196 = sbr.rel (%p194) target = $region40
        $region39: #{block_language_model_forward.4} parent=27 // pred_region
          %v197 = vld [vmem:[#allocation3] sm:$0xff]
          %v198 = vld [vmem:[#allocation3 + $0x8] sm:$0xff]
          %v199 = vld [vmem:[#allocation3 + $0x10] sm:$0xff]
          %v200 = vld [vmem:[#allocation3 + $0x18] sm:$0xff]
          %v201 = vld [vmem:[#allocation3 + $0x20] sm:$0xff]
          %v202 = vld [vmem:[#allocation3 + $0x28] sm:$0xff]
          %v203 = vld [vmem:[#allocation3 + $0x30] sm:$0xff]
          %v204 = vld [vmem:[#allocation3 + $0x38] sm:$0xff]
          %v205 = vld [vmem:[#allocation3 + $0x40] sm:$0xff]
          %v206 = vld [vmem:[#allocation3 + $0x48] sm:$0xff]
          %v207 = vld [vmem:[#allocation3 + $0x50] sm:$0xff]
          %v208 = vld [vmem:[#allocation3 + $0x58] sm:$0xff]
          %v209 = vld [vmem:[#allocation3 + $0x60] sm:$0xff]
          %v210 = vld [vmem:[#allocation3 + $0x68] sm:$0xff]
          %v211 = vld [vmem:[#allocation3 + $0x70] sm:$0xff]
          %v212 = vld [vmem:[#allocation3 + $0x78] sm:$0xff]
          %213 = vst [vmem:[#allocation2] sm:$0xff] %v197
          %214 = vst [vmem:[#allocation2 + $0x8] sm:$0xff] %v198
          %215 = vst [vmem:[#allocation2 + $0x10] sm:$0xff] %v199
          %216 = vst [vmem:[#allocation2 + $0x18] sm:$0xff] %v200
          %217 = vst [vmem:[#allocation2 + $0x20] sm:$0xff] %v201
          %218 = vst [vmem:[#allocation2 + $0x28] sm:$0xff] %v202
          %219 = vst [vmem:[#allocation2 + $0x30] sm:$0xff] %v203
          %220 = vst [vmem:[#allocation2 + $0x38] sm:$0xff] %v204
          %221 = vst [vmem:[#allocation2 + $0x40] sm:$0xff] %v205
          %222 = vst [vmem:[#allocation2 + $0x48] sm:$0xff] %v206
          %223 = vst [vmem:[#allocation2 + $0x50] sm:$0xff] %v207
          %224 = vst [vmem:[#allocation2 + $0x58] sm:$0xff] %v208
          %225 = vst [vmem:[#allocation2 + $0x60] sm:$0xff] %v209
          %226 = vst [vmem:[#allocation2 + $0x68] sm:$0xff] %v210
          %227 = vst [vmem:[#allocation2 + $0x70] sm:$0xff] %v211
          %228 = vst [vmem:[#allocation2 + $0x78] sm:$0xff] %v212
        $region40: #{block_language_model_forward.4} parent=27 // pred_fallthru
          _
        %v229 = vld [vmem:[#allocation2] sm:$0xff]
        %v230 = vld [vmem:[#allocation2 + $0x8] sm:$0xff]
        %v231 = vld [vmem:[#allocation2 + $0x10] sm:$0xff]
        %v232 = vld [vmem:[#allocation2 + $0x18] sm:$0xff]
        %v233 = vld [vmem:[#allocation2 + $0x20] sm:$0xff]
        %v234 = vld [vmem:[#allocation2 + $0x28] sm:$0xff]
        %v235 = vld [vmem:[#allocation2 + $0x30] sm:$0xff]
        %v236 = vld [vmem:[#allocation2 + $0x38] sm:$0xff]
        %v237 = vld [vmem:[#allocation2 + $0x40] sm:$0xff]
        %v238 = vld [vmem:[#allocation2 + $0x48] sm:$0xff]
        %v239 = vld [vmem:[#allocation2 + $0x50] sm:$0xff]
        %v240 = vld [vmem:[#allocation2 + $0x58] sm:$0xff]
        %v241 = vld [vmem:[#allocation2 + $0x60] sm:$0xff]
        %v242 = vld [vmem:[#allocation2 + $0x68] sm:$0xff]
        %v243 = vld [vmem:[#allocation2 + $0x70] sm:$0xff]
        %v244 = vld [vmem:[#allocation2 + $0x78] sm:$0xff]
        %v245 = vpack.c.bf16 %v230, %v229
        %v246 = vpack.c.bf16 %v232, %v231
        %v247 = vpack.c.bf16 %v234, %v233
        %v248 = vpack.c.bf16 %v236, %v235
        %v249 = vpack.c.bf16 %v238, %v237
        %v250 = vpack.c.bf16 %v240, %v239
        %v251 = vpack.c.bf16 %v242, %v241
        %v252 = vpack.c.bf16 %v244, %v243
        %v253 = vld [vmem:[%s174] sm:$0xff]
        %v254 = vld [vmem:[%s174 + $0x8] sm:$0xff]
        %v255 = vld [vmem:[%s174 + $0x10] sm:$0xff]
        %v256 = vld [vmem:[%s174 + $0x18] sm:$0xff]
        %v257 = vld [vmem:[%s174 + $0x20] sm:$0xff]
        %v258 = vld [vmem:[%s174 + $0x28] sm:$0xff]
        %v259 = vld [vmem:[%s174 + $0x30] sm:$0xff]
        %v260 = vld [vmem:[%s174 + $0x38] sm:$0xff]
        %v261 = vld [vmem:[%s174 + $0x40] sm:$0xff]
        %v262 = vld [vmem:[%s174 + $0x48] sm:$0xff]
        %v263 = vld [vmem:[%s174 + $0x50] sm:$0xff]
        %v264 = vld [vmem:[%s174 + $0x58] sm:$0xff]
        %v265 = vld [vmem:[%s174 + $0x60] sm:$0xff]
        %v266 = vld [vmem:[%s174 + $0x68] sm:$0xff]
        %v267 = vld [vmem:[%s174 + $0x70] sm:$0xff]
        %v268 = vld [vmem:[%s174 + $0x78] sm:$0xff]
        %v269 = vpack.c.bf16 %v254, %v253
        %v270 = vpack.c.bf16 %v256, %v255
        %v271 = vpack.c.bf16 %v258, %v257
        %v272 = vpack.c.bf16 %v260, %v259
        %v273 = vpack.c.bf16 %v262, %v261
        %v274 = vpack.c.bf16 %v264, %v263
        %v275 = vpack.c.bf16 %v266, %v265
        %v276 = vpack.c.bf16 %v268, %v267
        %277 = vmatprep.subr.bf16.mxu0 0
        %278 = vmatpush1.bf16.msra.mxu0 %v269
        %279 = vmatprep.subr.bf16.mxu0 0
        %280 = vmatpush1.bf16.msra.mxu0 %v270
        %281 = vmatprep.subr.bf16.mxu0 0
        %282 = vmatpush1.bf16.msra.mxu0 %v271
        %283 = vmatprep.subr.bf16.mxu0 0
        %284 = vmatpush1.bf16.msra.mxu0 %v272
        %285 = vmatprep.subr.bf16.mxu0 0
        %286 = vmatpush1.bf16.msra.mxu0 %v273
        %287 = vmatprep.subr.bf16.mxu0 0
        %288 = vmatpush1.bf16.msra.mxu0 %v274
        %289 = vmatprep.subr.bf16.mxu0 0
        %290 = vmatpush1.bf16.msra.mxu0 %v275
        %291 = vmatprep.subr.bf16.mxu0 0
        %292 = vmatpush1.bf16.msra.mxu0 %v276
        %293 = vmatprep.subr.bf16.mxu0 0
        %294 = vmatpush1.bf16.msra.mxu0 0
        %295 = vmatprep.subr.bf16.mxu0 0
        %296 = vmatpush1.bf16.msra.mxu0 0
        %297 = vmatprep.subr.bf16.mxu0 0
        %298 = vmatpush1.bf16.msra.mxu0 0
        %299 = vmatprep.subr.bf16.mxu0 0
        %300 = vmatpush1.bf16.msra.mxu0 0
        %301 = vmatprep.subr.bf16.mxu0 0
        %302 = vmatpush1.bf16.msra.mxu0 0
        %303 = vmatprep.subr.bf16.mxu0 0
        %304 = vmatpush1.bf16.msra.mxu0 0
        %305 = vmatprep.subr.bf16.mxu0 0
        %306 = vmatpush1.bf16.msra.mxu0 0
        %307 = vmatprep.subr.bf16.mxu0 0
        %308 = vmatpush1.bf16.msra.mxu0 0
        %309 = vmatprep.mubr.bf16.mxu0 0
        %310 = vmatmul.mubr.bf16.gmra.mrb[0].mxu0 %v245
        %v311 = vpop.f32.mrb[0].mxu0
        %v312 = vadd.f32 0.0, %v311
        %v313 = vpop.f32.mrb[0].mxu0
        %v314 = vpop.f32.mrb[0].mxu0
        %v315 = vadd.f32 0.0, %v314
        %v316 = vpop.f32.mrb[0].mxu0
        %317 = vmatprep.mubr.bf16.mxu0 0
        %318 = vmatmul.mubr.bf16.gmra.mrb[0].mxu0 %v246
        %v319 = vpop.f32.mrb[0].mxu0
        %v320 = vadd.f32 0.0, %v319
        %v321 = vpop.f32.mrb[0].mxu0
        %v322 = vpop.f32.mrb[0].mxu0
        %v323 = vadd.f32 0.0, %v322
        %v324 = vpop.f32.mrb[0].mxu0
        %325 = vmatprep.mubr.bf16.mxu0 0
        %326 = vmatmul.mubr.bf16.gmra.mrb[0].mxu0 %v247
        %v327 = vpop.f32.mrb[0].mxu0
        %v328 = vadd.f32 0.0, %v327
        %v329 = vpop.f32.mrb[0].mxu0
        %v330 = vpop.f32.mrb[0].mxu0
        %v331 = vadd.f32 0.0, %v330
        %v332 = vpop.f32.mrb[0].mxu0
        %333 = vmatprep.mubr.bf16.mxu0 0
        %334 = vmatmul.mubr.bf16.gmra.mrb[0].mxu0 %v248
        %v335 = vpop.f32.mrb[0].mxu0
        %v336 = vadd.f32 0.0, %v335
        %v337 = vpop.f32.mrb[0].mxu0
        %v338 = vpop.f32.mrb[0].mxu0
        %v339 = vadd.f32 0.0, %v338
        %v340 = vpop.f32.mrb[0].mxu0
        %341 = vmatprep.mubr.bf16.mxu0 0
        %342 = vmatmul.mubr.bf16.gmra.mrb[0].mxu0 %v249
        %v343 = vpop.f32.mrb[0].mxu0
        %v344 = vadd.f32 0.0, %v343
        %v345 = vpop.f32.mrb[0].mxu0
        %v346 = vpop.f32.mrb[0].mxu0
        %v347 = vadd.f32 0.0, %v346
        %v348 = vpop.f32.mrb[0].mxu0
        %349 = vmatprep.mubr.bf16.mxu0 0
        %350 = vmatmul.mubr.bf16.gmra.mrb[0].mxu0 %v250
        %v351 = vpop.f32.mrb[0].mxu0
        %v352 = vadd.f32 0.0, %v351
        %v353 = vpop.f32.mrb[0].mxu0
        %v354 = vpop.f32.mrb[0].mxu0
        %v355 = vadd.f32 0.0, %v354
        %v356 = vpop.f32.mrb[0].mxu0
        %357 = vmatprep.mubr.bf16.mxu0 0
        %358 = vmatmul.mubr.bf16.gmra.mrb[0].mxu0 %v251
        %v359 = vpop.f32.mrb[0].mxu0
        %v360 = vadd.f32 0.0, %v359
        %v361 = vpop.f32.mrb[0].mxu0
        %v362 = vpop.f32.mrb[0].mxu0
        %v363 = vadd.f32 0.0, %v362
        %v364 = vpop.f32.mrb[0].mxu0
        %365 = vmatprep.mubr.bf16.mxu0 0
        %366 = vmatmul.mubr.bf16.gmra.mrb[0].mxu0 %v252
        %v367 = vpop.f32.mrb[0].mxu0
        %v368 = vadd.f32 0.0, %v367
        %v369 = vpop.f32.mrb[0].mxu0
        %v370 = vpop.f32.mrb[0].mxu0
        %v371 = vadd.f32 0.0, %v370
        %v372 = vpop.f32.mrb[0].mxu0
        %373 = vdwg.mxu0
        %v374 = vadd.f32 %v229, %v312
        %v375 = vadd.f32 %v230, %v315
        %v376 = vadd.f32 %v231, %v320
        %v377 = vadd.f32 %v232, %v323
        %v378 = vadd.f32 %v233, %v328
        %v379 = vadd.f32 %v234, %v331
        %v380 = vadd.f32 %v235, %v336
        %v381 = vadd.f32 %v236, %v339
        %v382 = vadd.f32 %v237, %v344
        %v383 = vadd.f32 %v238, %v347
        %v384 = vadd.f32 %v239, %v352
        %v385 = vadd.f32 %v240, %v355
        %v386 = vadd.f32 %v241, %v360
        %v387 = vadd.f32 %v242, %v363
        %v388 = vadd.f32 %v243, %v368
        %v389 = vadd.f32 %v244, %v371
        %390 = vst [vmem:[#allocation2] sm:$0xff] %v374
        %391 = vst [vmem:[#allocation2 + $0x8] sm:$0xff] %v375
        %392 = vst [vmem:[#allocation2 + $0x10] sm:$0xff] %v376
        %393 = vst [vmem:[#allocation2 + $0x18] sm:$0xff] %v377
        %394 = vst [vmem:[#allocation2 + $0x20] sm:$0xff] %v378
        %395 = vst [vmem:[#allocation2 + $0x28] sm:$0xff] %v379
        %396 = vst [vmem:[#allocation2 + $0x30] sm:$0xff] %v380
        %397 = vst [vmem:[#allocation2 + $0x38] sm:$0xff] %v381
        %398 = vst [vmem:[#allocation2 + $0x40] sm:$0xff] %v382
        %399 = vst [vmem:[#allocation2 + $0x48] sm:$0xff] %v383
        %400 = vst [vmem:[#allocation2 + $0x50] sm:$0xff] %v384
        %401 = vst [vmem:[#allocation2 + $0x58] sm:$0xff] %v385
        %402 = vst [vmem:[#allocation2 + $0x60] sm:$0xff] %v386
        %403 = vst [vmem:[#allocation2 + $0x68] sm:$0xff] %v387
        %404 = vst [vmem:[#allocation2 + $0x70] sm:$0xff] %v388
        %405 = vst [vmem:[#allocation2 + $0x78] sm:$0xff] %v389
        %p406 = scmp.eq.s32.totalorder %s23, 1
        // Predicated region
        $region41: #{block_language_model_forward.4} parent=27 // pred_check
          %p407 = pneg %p406
        $region42: #{block_language_model_forward.4} parent=27 // pred_check_branch
          %409 = sbr.rel (%p407) target = $region44
        $region43: #{block_language_model_forward.4} parent=27 // pred_region
          %v410 = vld [vmem:[#allocation2] sm:$0xff]
          %v411 = vld [vmem:[#allocation2 + $0x8] sm:$0xff]
          %v412 = vld [vmem:[#allocation2 + $0x10] sm:$0xff]
          %v413 = vld [vmem:[#allocation2 + $0x18] sm:$0xff]
          %v414 = vld [vmem:[#allocation2 + $0x20] sm:$0xff]
          %v415 = vld [vmem:[#allocation2 + $0x28] sm:$0xff]
          %v416 = vld [vmem:[#allocation2 + $0x30] sm:$0xff]
          %v417 = vld [vmem:[#allocation2 + $0x38] sm:$0xff]
          %v418 = vld [vmem:[#allocation2 + $0x40] sm:$0xff]
          %v419 = vld [vmem:[#allocation2 + $0x48] sm:$0xff]
          %v420 = vld [vmem:[#allocation2 + $0x50] sm:$0xff]
          %v421 = vld [vmem:[#allocation2 + $0x58] sm:$0xff]
          %v422 = vld [vmem:[#allocation2 + $0x60] sm:$0xff]
          %v423 = vld [vmem:[#allocation2 + $0x68] sm:$0xff]
          %v424 = vld [vmem:[#allocation2 + $0x70] sm:$0xff]
          %v425 = vld [vmem:[#allocation2 + $0x78] sm:$0xff]
          %426 = vst [vmem:[#allocation8] sm:$0xff] %v410
          %427 = vst [vmem:[#allocation8 + $0x8] sm:$0xff] %v411
          %428 = vst [vmem:[#allocation8 + $0x10] sm:$0xff] %v412
          %429 = vst [vmem:[#allocation8 + $0x18] sm:$0xff] %v413
          %430 = vst [vmem:[#allocation8 + $0x20] sm:$0xff] %v414
          %431 = vst [vmem:[#allocation8 + $0x28] sm:$0xff] %v415
          %432 = vst [vmem:[#allocation8 + $0x30] sm:$0xff] %v416
          %433 = vst [vmem:[#allocation8 + $0x38] sm:$0xff] %v417
          %434 = vst [vmem:[#allocation8 + $0x40] sm:$0xff] %v418
          %435 = vst [vmem:[#allocation8 + $0x48] sm:$0xff] %v419
          %436 = vst [vmem:[#allocation8 + $0x50] sm:$0xff] %v420
          %437 = vst [vmem:[#allocation8 + $0x58] sm:$0xff] %v421
          %438 = vst [vmem:[#allocation8 + $0x60] sm:$0xff] %v422
          %439 = vst [vmem:[#allocation8 + $0x68] sm:$0xff] %v423
          %440 = vst [vmem:[#allocation8 + $0x70] sm:$0xff] %v424
          %441 = vst [vmem:[#allocation8 + $0x78] sm:$0xff] %v425
        $region44: #{block_language_model_forward.4} parent=27 // pred_fallthru
          _
        // Predicated region
        $region45: #{block_language_model_forward.4} parent=27 // pred_check
          %p442 = pneg %p100
        $region46: #{block_language_model_forward.4} parent=27 // pred_check_branch
          %444 = sbr.rel (%p442) target = $region48
        $region47: #{block_language_model_forward.4} parent=27 // pred_region
          %s445 = smul.u32 16, %s22
          %s447 = ssub.s32 2048, 2048
          %448 = vsyncadd [#allocation5], %s447
          %s449 = smul.addr %s445, 128
          %s450 = scalar_lea.hbm %s2, %s449
          %s451 = sshll.u32 [#allocation8], 4
          %s452 = int_to_ptr.vmem [resolvable:$true] %s451
          %457 = dma.vmem_to_hbm [thread:$0]  %s452, 2048, %s450, [#allocation5], 128, 128, 8
        $region48: #{block_language_model_forward.4} parent=27 // pred_fallthru
          _
        // Predicated region
        $region49: #{block_language_model_forward.4} parent=27 // pred_check
          %p458 = pneg %p100
        $region50: #{block_language_model_forward.4} parent=27 // pred_check_branch
          %460 = sbr.rel (%p458) target = $region52
        $region51: #{block_language_model_forward.4} parent=27 // pred_region
          %461 = dma.done [#allocation5], 2048
        $region52: #{block_language_model_forward.4} parent=27 // pred_fallthru
          _
      $region28: #{block_language_model_forward.4} parent=5 // pred_fallthru
        _
      %p462 = scmp.le.s32.totalorder 2, %s13
      // Predicated region
      $region53: #{block_language_model_forward.4} parent=5 // pred_check
        %p463 = pneg %p462
      $region54: #{block_language_model_forward.4} parent=5 // pred_check_branch
        %465 = sbr.rel (%p463) target = $region56
      $region55: #{block_language_model_forward.4} parent=5 // pred_region
        %s466 = ssub.s32 %s13, 2
      $region56: #{block_language_model_forward.4} parent=5 // pred_fallthru
        _
    $region6: #{block_language_model_forward.4} parent=1 // loop_footer
      %s17 = sadd.s32 1, %s13
    $region7: #{block_language_model_forward.4} parent=1 // loop_footer_branch
      %12 = sbr.rel target = $region3
    $region8: #{block_language_model_forward.4} parent=1 // loop_exit
      _
    %467 = vsyncpa [#allocation4], 1
    %s468 = scalar_lea.sflag [#allocation4], 1
    %469 = vsyncpa %s468, 1
    %470 = vsyncpa [#allocation7], 1
    %s471 = scalar_lea.sflag [#allocation7], 1
    %472 = vsyncpa %s471, 1
    %473 = vsyncpa [#allocation5], 1
    %s474 = scalar_lea.sflag [#allocation5], 1
    %475 = vsyncpa %s474, 1

// kernel: block_language_model_forward.5
$region0: #{block_language_model_forward.5}
  #allocation0 [shape = 'u32[]', space=smem, size = 0x4, offset = 0x4, fixed_abs, tag = 'smem constant byte address 0x4 - core index']
  #allocation1 [shape = 'u32[144,128]{1,0:T(1,128)}', space=vmem, size = 0x12000, scoped, tag = 'internal scratch']
  #allocation2 [shape = 'bf16[128,128]{1,0:T(16,128)(2,1)}', space=vmem, size = 0x8000, scoped, tag = 'scratch operand']
  %s0 = inlined_call_operand.hbm [shape: f32[128,128], index: 0, kind: input, shape index: {}]
  %s1 = inlined_call_operand.hbm [shape: f32[1,128], index: 1, kind: input, shape index: {}]
  %s2 = inlined_call_operand.hbm [shape: f32[256,128], index: 2, kind: input, shape index: {}]
  %s3 = inlined_call_operand.hbm [shape: f32[128,256], index: 3, kind: output, shape index: {}]
  %s4 = sld [smem:[#allocation0]]
  $region38: #{block_language_model_forward.5} parent=0
    _
  %s6 = ssub.s32 1, %s4
  %s7 = scalar_select 0, %s6, %s4
  $region1: #{block_language_model_forward.5} parent=0
    #allocation3 [shape = 'u8[65536]{0}', space=vmem, size = 0x10000, scoped, tag = 'input window, operand 0, single buffered']
    #allocation4 [shape = 's32[1]{0}', space=sflag, size = 0x4, scoped, tag = 'scoped memory for block_language_model_forward.5']
    #allocation5 [shape = 's32[1]{0}', space=sflag, size = 0x4, scoped, tag = 'scoped memory for block_language_model_forward.5']
    #allocation6 [shape = 'u8[512]{0}', space=vmem, size = 0x400, scoped, tag = 'input window, operand 1, single buffered']
    #allocation7 [shape = 's32[1]{0}', space=sflag, size = 0x4, scoped, tag = 'scoped memory for block_language_model_forward.5']
    #allocation8 [shape = 'u8[131072]{0}', space=vmem, size = 0x20000, scoped, tag = 'input window, operand 2, single buffered']
    #allocation9 [shape = 'u8[131072]{0}', space=vmem, size = 0x20000, scoped, tag = 'output window, operand 0, single buffered']
    %8 = vsyncpa [#allocation4], 0
    %9 = vsyncpa [#allocation7], 0
    %10 = vsyncpa [#allocation5], 0
    // Predicated region
    $region2: #{block_language_model_forward.5} parent=1 // pred_check
      _
    $region3: #{block_language_model_forward.5} parent=1 // pred_check_branch
      %12 = sbr.rel (0) target = $region5
    $region4: #{block_language_model_forward.5} parent=1 // pred_region
      %s14 = ssub.s32 2048, 2048
      %15 = vsyncadd [#allocation4], %s14
      %s16 = sshll.u32 [#allocation3], 4
      %s17 = int_to_ptr.vmem [resolvable:$true] %s16
      %22 = dma.hbm_to_vmem [thread:$0]  %s0, 2048, %s17, [#allocation4], 128, 128, 8
    $region5: #{block_language_model_forward.5} parent=1 // pred_fallthru
      _
    // Predicated region
    $region6: #{block_language_model_forward.5} parent=1 // pred_check
      _
    $region7: #{block_language_model_forward.5} parent=1 // pred_check_branch
      %24 = sbr.rel (0) target = $region9
    $region8: #{block_language_model_forward.5} parent=1 // pred_region
      %s26 = ssub.s32 16, 16
      %27 = vsyncadd [#allocation7], %s26
      %s29 = sshll.u32 [#allocation6], 4
      %s30 = int_to_ptr.vmem [resolvable:$true] %s29
      %32 = dma.hbm_to_vmem [thread:$0]  %s1, 16, %s30, [#allocation7]
    $region9: #{block_language_model_forward.5} parent=1 // pred_fallthru
      _
    // Predicated region
    $region10: #{block_language_model_forward.5} parent=1 // pred_check
      _
    $region11: #{block_language_model_forward.5} parent=1 // pred_check_branch
      %34 = sbr.rel (0) target = $region13
    $region12: #{block_language_model_forward.5} parent=1 // pred_region
      %s36 = ssub.s32 4096, 4096
      %37 = vsyncadd [#allocation7], %s36
      %s38 = sshll.u32 [#allocation8], 4
      %s39 = int_to_ptr.vmem [resolvable:$true] %s38
      %44 = dma.hbm_to_vmem [thread:$0]  %s2, 4096, %s39, [#allocation7], 128, 128, 8
    $region13: #{block_language_model_forward.5} parent=1 // pred_fallthru
      _
    // Predicated region
    $region14: #{block_language_model_forward.5} parent=1 // pred_check
      _
    $region15: #{block_language_model_forward.5} parent=1 // pred_check_branch
      %46 = sbr.rel (0) target = $region17
    $region16: #{block_language_model_forward.5} parent=1 // pred_region
      %47 = dma.done [#allocation4], 2048
    $region17: #{block_language_model_forward.5} parent=1 // pred_fallthru
      _
    // Predicated region
    $region18: #{block_language_model_forward.5} parent=1 // pred_check
      _
    $region19: #{block_language_model_forward.5} parent=1 // pred_check_branch
      %49 = sbr.rel (0) target = $region21
    $region20: #{block_language_model_forward.5} parent=1 // pred_region
      %50 = dma.done [#allocation7], 16
    $region21: #{block_language_model_forward.5} parent=1 // pred_fallthru
      _
    // Predicated region
    $region22: #{block_language_model_forward.5} parent=1 // pred_check
      _
    $region23: #{block_language_model_forward.5} parent=1 // pred_check_branch
      %52 = sbr.rel (0) target = $region25
    $region24: #{block_language_model_forward.5} parent=1 // pred_region
      %53 = dma.done [#allocation7], 4096
    $region25: #{block_language_model_forward.5} parent=1 // pred_fallthru
      _
    %p55 = scmp.eq.s32.totalorder 0, 0
    // Predicated region
    $region26: #{block_language_model_forward.5} parent=1 // pred_check
      %p56 = pneg %p55
    $region27: #{block_language_model_forward.5} parent=1 // pred_check_branch
      %58 = sbr.rel (%p56) target = $region29
    $region28: #{block_language_model_forward.5} parent=1 // pred_region
      %v59 = vld [vmem:[#allocation3] sm:$0xff]
      %v60 = vld [vmem:[#allocation3 + $0x8] sm:$0xff]
      %v61 = vld [vmem:[#allocation3 + $0x10] sm:$0xff]
      %v62 = vld [vmem:[#allocation3 + $0x18] sm:$0xff]
      %v63 = vld [vmem:[#allocation3 + $0x20] sm:$0xff]
      %v64 = vld [vmem:[#allocation3 + $0x28] sm:$0xff]
      %v65 = vld [vmem:[#allocation3 + $0x30] sm:$0xff]
      %v66 = vld [vmem:[#allocation3 + $0x38] sm:$0xff]
      %v67 = vld [vmem:[#allocation3 + $0x40] sm:$0xff]
      %v68 = vld [vmem:[#allocation3 + $0x48] sm:$0xff]
      %v69 = vld [vmem:[#allocation3 + $0x50] sm:$0xff]
      %v70 = vld [vmem:[#allocation3 + $0x58] sm:$0xff]
      %v71 = vld [vmem:[#allocation3 + $0x60] sm:$0xff]
      %v72 = vld [vmem:[#allocation3 + $0x68] sm:$0xff]
      %v73 = vld [vmem:[#allocation3 + $0x70] sm:$0xff]
      %v74 = vld [vmem:[#allocation3 + $0x78] sm:$0xff]
      %v75 = vmul.f32 %v59, %v59
      %v76 = vmul.f32 %v60, %v60
      %v77 = vmul.f32 %v61, %v61
      %v78 = vmul.f32 %v62, %v62
      %v79 = vmul.f32 %v63, %v63
      %v80 = vmul.f32 %v64, %v64
      %v81 = vmul.f32 %v65, %v65
      %v82 = vmul.f32 %v66, %v66
      %v83 = vmul.f32 %v67, %v67
      %v84 = vmul.f32 %v68, %v68
      %v85 = vmul.f32 %v69, %v69
      %v86 = vmul.f32 %v70, %v70
      %v87 = vmul.f32 %v71, %v71
      %v88 = vmul.f32 %v72, %v72
      %v89 = vmul.f32 %v73, %v73
      %v90 = vmul.f32 %v74, %v74
      %91 = vadd.xlane.f32.xlu0 %v75
      %v92 = vpop.xlane.xlu0 %91
      %93 = vadd.xlane.f32.xlu0 %v76
      %v94 = vpop.xlane.xlu0 %93
      %95 = vadd.xlane.f32.xlu0 %v77
      %v96 = vpop.xlane.xlu0 %95
      %97 = vadd.xlane.f32.xlu0 %v78
      %v98 = vpop.xlane.xlu0 %97
      %99 = vadd.xlane.f32.xlu0 %v79
      %v100 = vpop.xlane.xlu0 %99
      %101 = vadd.xlane.f32.xlu0 %v80
      %v102 = vpop.xlane.xlu0 %101
      %103 = vadd.xlane.f32.xlu0 %v81
      %v104 = vpop.xlane.xlu0 %103
      %105 = vadd.xlane.f32.xlu0 %v82
      %v106 = vpop.xlane.xlu0 %105
      %107 = vadd.xlane.f32.xlu0 %v83
      %v108 = vpop.xlane.xlu0 %107
      %109 = vadd.xlane.f32.xlu0 %v84
      %v110 = vpop.xlane.xlu0 %109
      %111 = vadd.xlane.f32.xlu0 %v85
      %v112 = vpop.xlane.xlu0 %111
      %113 = vadd.xlane.f32.xlu0 %v86
      %v114 = vpop.xlane.xlu0 %113
      %115 = vadd.xlane.f32.xlu0 %v87
      %v116 = vpop.xlane.xlu0 %115
      %117 = vadd.xlane.f32.xlu0 %v88
      %v118 = vpop.xlane.xlu0 %117
      %119 = vadd.xlane.f32.xlu0 %v89
      %v120 = vpop.xlane.xlu0 %119
      %121 = vadd.xlane.f32.xlu0 %v90
      %v122 = vpop.xlane.xlu0 %121
      %v123 = vrcp.pop 128.0
      %v124 = vmul.f32 %v92, %v123
      %v125 = vmul.f32 %v94, %v123
      %v126 = vmul.f32 %v96, %v123
      %v127 = vmul.f32 %v98, %v123
      %v128 = vmul.f32 %v100, %v123
      %v129 = vmul.f32 %v102, %v123
      %v130 = vmul.f32 %v104, %v123
      %v131 = vmul.f32 %v106, %v123
      %v132 = vmul.f32 %v108, %v123
      %v133 = vmul.f32 %v110, %v123
      %v134 = vmul.f32 %v112, %v123
      %v135 = vmul.f32 %v114, %v123
      %v136 = vmul.f32 %v116, %v123
      %v137 = vmul.f32 %v118, %v123
      %v138 = vmul.f32 %v120, %v123
      %v139 = vmul.f32 %v122, %v123
      %v140 = vadd.f32 %v124, 1e-05
      %v141 = vadd.f32 %v125, 1e-05
      %v142 = vadd.f32 %v126, 1e-05
      %v143 = vadd.f32 %v127, 1e-05
      %v144 = vadd.f32 %v128, 1e-05
      %v145 = vadd.f32 %v129, 1e-05
      %v146 = vadd.f32 %v130, 1e-05
      %v147 = vadd.f32 %v131, 1e-05
      %v148 = vadd.f32 %v132, 1e-05
      %v149 = vadd.f32 %v133, 1e-05
      %v150 = vadd.f32 %v134, 1e-05
      %v151 = vadd.f32 %v135, 1e-05
      %v152 = vadd.f32 %v136, 1e-05
      %v153 = vadd.f32 %v137, 1e-05
      %v154 = vadd.f32 %v138, 1e-05
      %v155 = vadd.f32 %v139, 1e-05
      %v156 = vrsqrt.pop %v140
      %v157 = vrsqrt.pop %v141
      %v158 = vrsqrt.pop %v142
      %v159 = vrsqrt.pop %v143
      %v160 = vrsqrt.pop %v144
      %v161 = vrsqrt.pop %v145
      %v162 = vrsqrt.pop %v146
      %v163 = vrsqrt.pop %v147
      %v164 = vrsqrt.pop %v148
      %v165 = vrsqrt.pop %v149
      %v166 = vrsqrt.pop %v150
      %v167 = vrsqrt.pop %v151
      %v168 = vrsqrt.pop %v152
      %v169 = vrsqrt.pop %v153
      %v170 = vrsqrt.pop %v154
      %v171 = vrsqrt.pop %v155
      %v172 = vmul.f32 %v59, %v156
      %v173 = vmul.f32 %v60, %v157
      %v174 = vmul.f32 %v61, %v158
      %v175 = vmul.f32 %v62, %v159
      %v176 = vmul.f32 %v63, %v160
      %v177 = vmul.f32 %v64, %v161
      %v178 = vmul.f32 %v65, %v162
      %v179 = vmul.f32 %v66, %v163
      %v180 = vmul.f32 %v67, %v164
      %v181 = vmul.f32 %v68, %v165
      %v182 = vmul.f32 %v69, %v166
      %v183 = vmul.f32 %v70, %v167
      %v184 = vmul.f32 %v71, %v168
      %v185 = vmul.f32 %v72, %v169
      %v186 = vmul.f32 %v73, %v170
      %v187 = vmul.f32 %v74, %v171
      %v188 = vld [vmem:[#allocation6] sm:$0x1]
      %v190 = vlaneseq
      %v191 = vshrl.u32 %v190, 7
      %v192 = vsub.s32 0, %v191
      %v193 = vrot.slane %v188, %v192
      %v195 = vmul.f32 %v172, %v193
      %v196 = vmul.f32 %v173, %v193
      %v197 = vmul.f32 %v174, %v193
      %v198 = vmul.f32 %v175, %v193
      %v199 = vmul.f32 %v176, %v193
      %v200 = vmul.f32 %v177, %v193
      %v201 = vmul.f32 %v178, %v193
      %v202 = vmul.f32 %v179, %v193
      %v203 = vmul.f32 %v180, %v193
      %v204 = vmul.f32 %v181, %v193
      %v205 = vmul.f32 %v182, %v193
      %v206 = vmul.f32 %v183, %v193
      %v207 = vmul.f32 %v184, %v193
      %v208 = vmul.f32 %v185, %v193
      %v209 = vmul.f32 %v186, %v193
      %v210 = vmul.f32 %v187, %v193
      %v211 = vpack.c.bf16 %v196, %v195
      %v212 = vpack.c.bf16 %v198, %v197
      %v213 = vpack.c.bf16 %v200, %v199
      %v214 = vpack.c.bf16 %v202, %v201
      %v215 = vpack.c.bf16 %v204, %v203
      %v216 = vpack.c.bf16 %v206, %v205
      %v217 = vpack.c.bf16 %v208, %v207
      %v218 = vpack.c.bf16 %v210, %v209
      %219 = vst [vmem:[#allocation2] sm:$0xff] %v211
      %220 = vst [vmem:[#allocation2 + $0x8] sm:$0xff] %v212
      %221 = vst [vmem:[#allocation2 + $0x10] sm:$0xff] %v213
      %222 = vst [vmem:[#allocation2 + $0x18] sm:$0xff] %v214
      %223 = vst [vmem:[#allocation2 + $0x20] sm:$0xff] %v215
      %224 = vst [vmem:[#allocation2 + $0x28] sm:$0xff] %v216
      %225 = vst [vmem:[#allocation2 + $0x30] sm:$0xff] %v217
      %226 = vst [vmem:[#allocation2 + $0x38] sm:$0xff] %v218
    $region29: #{block_language_model_forward.5} parent=1 // pred_fallthru
      _
    %v227 = vld [vmem:[#allocation2] sm:$0xff]
    %v228 = vld [vmem:[#allocation2 + $0x8] sm:$0xff]
    %v229 = vld [vmem:[#allocation2 + $0x10] sm:$0xff]
    %v230 = vld [vmem:[#allocation2 + $0x18] sm:$0xff]
    %v231 = vld [vmem:[#allocation2 + $0x20] sm:$0xff]
    %v232 = vld [vmem:[#allocation2 + $0x28] sm:$0xff]
    %v233 = vld [vmem:[#allocation2 + $0x30] sm:$0xff]
    %v234 = vld [vmem:[#allocation2 + $0x38] sm:$0xff]
    %v235 = vld [vmem:[#allocation8] sm:$0xff]
    %v236 = vld [vmem:[#allocation8 + $0x8] sm:$0xff]
    %v237 = vld [vmem:[#allocation8 + $0x10] sm:$0xff]
    %v238 = vld [vmem:[#allocation8 + $0x18] sm:$0xff]
    %v239 = vld [vmem:[#allocation8 + $0x20] sm:$0xff]
    %v240 = vld [vmem:[#allocation8 + $0x28] sm:$0xff]
    %v241 = vld [vmem:[#allocation8 + $0x30] sm:$0xff]
    %v242 = vld [vmem:[#allocation8 + $0x38] sm:$0xff]
    %v243 = vld [vmem:[#allocation8 + $0x40] sm:$0xff]
    %v244 = vld [vmem:[#allocation8 + $0x48] sm:$0xff]
    %v245 = vld [vmem:[#allocation8 + $0x50] sm:$0xff]
    %v246 = vld [vmem:[#allocation8 + $0x58] sm:$0xff]
    %v247 = vld [vmem:[#allocation8 + $0x60] sm:$0xff]
    %v248 = vld [vmem:[#allocation8 + $0x68] sm:$0xff]
    %v249 = vld [vmem:[#allocation8 + $0x70] sm:$0xff]
    %v250 = vld [vmem:[#allocation8 + $0x78] sm:$0xff]
    %v251 = vld [vmem:[#allocation8 + $0x80] sm:$0xff]
    %v252 = vld [vmem:[#allocation8 + $0x88] sm:$0xff]
    %v253 = vld [vmem:[#allocation8 + $0x90] sm:$0xff]
    %v254 = vld [vmem:[#allocation8 + $0x98] sm:$0xff]
    %v255 = vld [vmem:[#allocation8 + $0xa0] sm:$0xff]
    %v256 = vld [vmem:[#allocation8 + $0xa8] sm:$0xff]
    %v257 = vld [vmem:[#allocation8 + $0xb0] sm:$0xff]
    %v258 = vld [vmem:[#allocation8 + $0xb8] sm:$0xff]
    %v259 = vld [vmem:[#allocation8 + $0xc0] sm:$0xff]
    %v260 = vld [vmem:[#allocation8 + $0xc8] sm:$0xff]
    %v261 = vld [vmem:[#allocation8 + $0xd0] sm:$0xff]
    %v262 = vld [vmem:[#allocation8 + $0xd8] sm:$0xff]
    %v263 = vld [vmem:[#allocation8 + $0xe0] sm:$0xff]
    %v264 = vld [vmem:[#allocation8 + $0xe8] sm:$0xff]
    %v265 = vld [vmem:[#allocation8 + $0xf0] sm:$0xff]
    %v266 = vld [vmem:[#allocation8 + $0xf8] sm:$0xff]
    %v267 = vpack.c.bf16 %v236, %v235
    %v268 = vpack.c.bf16 %v238, %v237
    %v269 = vpack.c.bf16 %v240, %v239
    %v270 = vpack.c.bf16 %v242, %v241
    %v271 = vpack.c.bf16 %v244, %v243
    %v272 = vpack.c.bf16 %v246, %v245
    %v273 = vpack.c.bf16 %v248, %v247
    %v274 = vpack.c.bf16 %v250, %v249
    %v275 = vpack.c.bf16 %v252, %v251
    %v276 = vpack.c.bf16 %v254, %v253
    %v277 = vpack.c.bf16 %v256, %v255
    %v278 = vpack.c.bf16 %v258, %v257
    %v279 = vpack.c.bf16 %v260, %v259
    %v280 = vpack.c.bf16 %v262, %v261
    %v281 = vpack.c.bf16 %v264, %v263
    %v282 = vpack.c.bf16 %v266, %v265
    %283 = vmatprep.subr.bf16.mxu0 0
    %284 = vmatpush1.bf16.xpose.msra.mxu0 %v267
    %285 = vmatprep.subr.bf16.mxu0 0
    %286 = vmatpush1.bf16.xpose.msra.mxu0 %v268
    %287 = vmatprep.subr.bf16.mxu0 0
    %288 = vmatpush1.bf16.xpose.msra.mxu0 %v269
    %289 = vmatprep.subr.bf16.mxu0 0
    %290 = vmatpush1.bf16.xpose.msra.mxu0 %v270
    %291 = vmatprep.subr.bf16.mxu0 0
    %292 = vmatpush1.bf16.xpose.msra.mxu0 %v271
    %293 = vmatprep.subr.bf16.mxu0 0
    %294 = vmatpush1.bf16.xpose.msra.mxu0 %v272
    %295 = vmatprep.subr.bf16.mxu0 0
    %296 = vmatpush1.bf16.xpose.msra.mxu0 %v273
    %297 = vmatprep.subr.bf16.mxu0 0
    %298 = vmatpush1.bf16.xpose.msra.mxu0 %v274
    %299 = vmatprep.subr.bf16.mxu0 0
    %300 = vmatpush1.bf16.xpose.msra.mxu0 %v275
    %301 = vmatprep.subr.bf16.mxu0 0
    %302 = vmatpush1.bf16.xpose.msra.mxu0 %v276
    %303 = vmatprep.subr.bf16.mxu0 0
    %304 = vmatpush1.bf16.xpose.msra.mxu0 %v277
    %305 = vmatprep.subr.bf16.mxu0 0
    %306 = vmatpush1.bf16.xpose.msra.mxu0 %v278
    %307 = vmatprep.subr.bf16.mxu0 0
    %308 = vmatpush1.bf16.xpose.msra.mxu0 %v279
    %309 = vmatprep.subr.bf16.mxu0 0
    %310 = vmatpush1.bf16.xpose.msra.mxu0 %v280
    %311 = vmatprep.subr.bf16.mxu0 0
    %312 = vmatpush1.bf16.xpose.msra.mxu0 %v281
    %313 = vmatprep.subr.bf16.mxu0 0
    %314 = vmatpush1.bf16.xpose.msra.mxu0 %v282
    %315 = vmatprep.mubr.bf16.mxu0 0
    %316 = vmatmul.mubr.bf16.gmra.mrb[0].mxu0 %v227
    %v317 = vpop.f32.mrb[0].mxu0
    %v318 = vadd.f32 0.0, %v317
    %v319 = vpop.f32.mrb[0].mxu0
    %v320 = vadd.f32 0.0, %v319
    %v321 = vpop.f32.mrb[0].mxu0
    %v322 = vadd.f32 0.0, %v321
    %v323 = vpop.f32.mrb[0].mxu0
    %v324 = vadd.f32 0.0, %v323
    %325 = vmatprep.mubr.bf16.mxu0 0
    %326 = vmatmul.mubr.bf16.gmra.mrb[0].mxu0 %v228
    %v327 = vpop.f32.mrb[0].mxu0
    %v328 = vadd.f32 0.0, %v327
    %v329 = vpop.f32.mrb[0].mxu0
    %v330 = vadd.f32 0.0, %v329
    %v331 = vpop.f32.mrb[0].mxu0
    %v332 = vadd.f32 0.0, %v331
    %v333 = vpop.f32.mrb[0].mxu0
    %v334 = vadd.f32 0.0, %v333
    %335 = vmatprep.mubr.bf16.mxu0 0
    %336 = vmatmul.mubr.bf16.gmra.mrb[0].mxu0 %v229
    %v337 = vpop.f32.mrb[0].mxu0
    %v338 = vadd.f32 0.0, %v337
    %v339 = vpop.f32.mrb[0].mxu0
    %v340 = vadd.f32 0.0, %v339
    %v341 = vpop.f32.mrb[0].mxu0
    %v342 = vadd.f32 0.0, %v341
    %v343 = vpop.f32.mrb[0].mxu0
    %v344 = vadd.f32 0.0, %v343
    %345 = vmatprep.mubr.bf16.mxu0 0
    %346 = vmatmul.mubr.bf16.gmra.mrb[0].mxu0 %v230
    %v347 = vpop.f32.mrb[0].mxu0
    %v348 = vadd.f32 0.0, %v347
    %v349 = vpop.f32.mrb[0].mxu0
    %v350 = vadd.f32 0.0, %v349
    %v351 = vpop.f32.mrb[0].mxu0
    %v352 = vadd.f32 0.0, %v351
    %v353 = vpop.f32.mrb[0].mxu0
    %v354 = vadd.f32 0.0, %v353
    %355 = vmatprep.mubr.bf16.mxu0 0
    %356 = vmatmul.mubr.bf16.gmra.mrb[0].mxu0 %v231
    %v357 = vpop.f32.mrb[0].mxu0
    %v358 = vadd.f32 0.0, %v357
    %v359 = vpop.f32.mrb[0].mxu0
    %v360 = vadd.f32 0.0, %v359
    %v361 = vpop.f32.mrb[0].mxu0
    %v362 = vadd.f32 0.0, %v361
    %v363 = vpop.f32.mrb[0].mxu0
    %v364 = vadd.f32 0.0, %v363
    %365 = vmatprep.mubr.bf16.mxu0 0
    %366 = vmatmul.mubr.bf16.gmra.mrb[0].mxu0 %v232
    %v367 = vpop.f32.mrb[0].mxu0
    %v368 = vadd.f32 0.0, %v367
    %v369 = vpop.f32.mrb[0].mxu0
    %v370 = vadd.f32 0.0, %v369
    %v371 = vpop.f32.mrb[0].mxu0
    %v372 = vadd.f32 0.0, %v371
    %v373 = vpop.f32.mrb[0].mxu0
    %v374 = vadd.f32 0.0, %v373
    %375 = vmatprep.mubr.bf16.mxu0 0
    %376 = vmatmul.mubr.bf16.gmra.mrb[0].mxu0 %v233
    %v377 = vpop.f32.mrb[0].mxu0
    %v378 = vadd.f32 0.0, %v377
    %v379 = vpop.f32.mrb[0].mxu0
    %v380 = vadd.f32 0.0, %v379
    %v381 = vpop.f32.mrb[0].mxu0
    %v382 = vadd.f32 0.0, %v381
    %v383 = vpop.f32.mrb[0].mxu0
    %v384 = vadd.f32 0.0, %v383
    %385 = vmatprep.mubr.bf16.mxu0 0
    %386 = vmatmul.mubr.bf16.gmra.mrb[0].mxu0 %v234
    %v387 = vpop.f32.mrb[0].mxu0
    %v388 = vadd.f32 0.0, %v387
    %v389 = vpop.f32.mrb[0].mxu0
    %v390 = vadd.f32 0.0, %v389
    %v391 = vpop.f32.mrb[0].mxu0
    %v392 = vadd.f32 0.0, %v391
    %v393 = vpop.f32.mrb[0].mxu0
    %v394 = vadd.f32 0.0, %v393
    %395 = vdwg.mxu0
    %396 = vst [vmem:[#allocation9] sm:$0xff] %v318
    %397 = vst [vmem:[#allocation9 + $0x8] sm:$0xff] %v320
    %398 = vst [vmem:[#allocation9 + $0x10] sm:$0xff] %v322
    %399 = vst [vmem:[#allocation9 + $0x18] sm:$0xff] %v324
    %400 = vst [vmem:[#allocation9 + $0x20] sm:$0xff] %v328
    %401 = vst [vmem:[#allocation9 + $0x28] sm:$0xff] %v330
    %402 = vst [vmem:[#allocation9 + $0x30] sm:$0xff] %v332
    %403 = vst [vmem:[#allocation9 + $0x38] sm:$0xff] %v334
    %404 = vst [vmem:[#allocation9 + $0x40] sm:$0xff] %v338
    %405 = vst [vmem:[#allocation9 + $0x48] sm:$0xff] %v340
    %406 = vst [vmem:[#allocation9 + $0x50] sm:$0xff] %v342
    %407 = vst [vmem:[#allocation9 + $0x58] sm:$0xff] %v344
    %408 = vst [vmem:[#allocation9 + $0x60] sm:$0xff] %v348
    %409 = vst [vmem:[#allocation9 + $0x68] sm:$0xff] %v350
    %410 = vst [vmem:[#allocation9 + $0x70] sm:$0xff] %v352
    %411 = vst [vmem:[#allocation9 + $0x78] sm:$0xff] %v354
    %412 = vst [vmem:[#allocation9 + $0x80] sm:$0xff] %v358
    %413 = vst [vmem:[#allocation9 + $0x88] sm:$0xff] %v360
    %414 = vst [vmem:[#allocation9 + $0x90] sm:$0xff] %v362
    %415 = vst [vmem:[#allocation9 + $0x98] sm:$0xff] %v364
    %416 = vst [vmem:[#allocation9 + $0xa0] sm:$0xff] %v368
    %417 = vst [vmem:[#allocation9 + $0xa8] sm:$0xff] %v370
    %418 = vst [vmem:[#allocation9 + $0xb0] sm:$0xff] %v372
    %419 = vst [vmem:[#allocation9 + $0xb8] sm:$0xff] %v374
    %420 = vst [vmem:[#allocation9 + $0xc0] sm:$0xff] %v378
    %421 = vst [vmem:[#allocation9 + $0xc8] sm:$0xff] %v380
    %422 = vst [vmem:[#allocation9 + $0xd0] sm:$0xff] %v382
    %423 = vst [vmem:[#allocation9 + $0xd8] sm:$0xff] %v384
    %424 = vst [vmem:[#allocation9 + $0xe0] sm:$0xff] %v388
    %425 = vst [vmem:[#allocation9 + $0xe8] sm:$0xff] %v390
    %426 = vst [vmem:[#allocation9 + $0xf0] sm:$0xff] %v392
    %427 = vst [vmem:[#allocation9 + $0xf8] sm:$0xff] %v394
    // Predicated region
    $region30: #{block_language_model_forward.5} parent=1 // pred_check
      _
    $region31: #{block_language_model_forward.5} parent=1 // pred_check_branch
      %429 = sbr.rel (0) target = $region33
    $region32: #{block_language_model_forward.5} parent=1 // pred_region
      %s431 = ssub.s32 4096, 4096
      %432 = vsyncadd [#allocation5], %s431
      %s433 = sshll.u32 [#allocation9], 4
      %s434 = int_to_ptr.vmem [resolvable:$true] %s433
      %439 = dma.vmem_to_hbm [thread:$0]  %s434, 4096, %s3, [#allocation5], 256, 256, 16
    $region33: #{block_language_model_forward.5} parent=1 // pred_fallthru
      _
    // Predicated region
    $region34: #{block_language_model_forward.5} parent=1 // pred_check
      _
    $region35: #{block_language_model_forward.5} parent=1 // pred_check_branch
      %441 = sbr.rel (0) target = $region37
    $region36: #{block_language_model_forward.5} parent=1 // pred_region
      %442 = dma.done [#allocation5], 4096
    $region37: #{block_language_model_forward.5} parent=1 // pred_fallthru
      _
    %443 = vsyncpa [#allocation4], 1
    %444 = vsyncpa [#allocation7], 1
    %445 = vsyncpa [#allocation5], 1

</llo_original>
